<compile_context>
chip_gen: v5e
topology: v5e:2x2
jax: 0.10.0
libtpu: 0.0.40
codegen_flags: <defaults>
</compile_context>

<pallas_src>
import math
import functools

import numpy as np
import jax
import jax.numpy as jnp
from jax.experimental import pallas as pl
from jax.experimental.pallas import tpu as pltpu

# ----- small, self-consistent model dims (ModelArgs analogue) -----
DIM = 32
N_HEADS = 4
N_KV_HEADS = 2
HEAD_DIM = DIM // N_HEADS            # 8
N_REP = N_HEADS // N_KV_HEADS        # 2
MAX_BATCH = 4
MAX_SEQ = 16

BATCH = 2
SEQ = 8
START_POS = 4                        # positions [0, START_POS) come from the (zero) cache


# ----------------------------- fused Pallas kernel -----------------------------

def _fused_attn_kernel(x_ref, wq_ref, wqs_ref, wk_ref, wks_ref, wv_ref, wo_ref,
                       cos_ref, sin_ref, ck_in_ref, cv_in_ref,
                       out_ref, ck_out_ref, cv_out_ref,
                       *, start_pos, scale, n_heads, n_rep, head_dim):
    """Per-batch fused body: QKV + RoPE + KV-cache scatter + GQA attention + out proj."""
    f32 = jnp.float32
    S, D = x_ref.shape
    MS, KHd = ck_in_ref.shape
    T = start_pos + S

    x = x_ref[...]                                                     # (S, D)
    # Projections.  x @ wqs == pairswap(x @ wq): the +/-1 interleaved pair-swap matrix is
    # folded into the weights on the host, so no in-kernel permutation is needed.
    q = jnp.dot(x, wq_ref[...], preferred_element_type=f32)            # (S, H*Hd)
    qs = jnp.dot(x, wqs_ref[...], preferred_element_type=f32)
    k = jnp.dot(x, wk_ref[...], preferred_element_type=f32)            # (S, Hkv*Hd)
    ks = jnp.dot(x, wks_ref[...], preferred_element_type=f32)
    v = jnp.dot(x, wv_ref[...], preferred_element_type=f32)            # (S, Hkv*Hd)

    # Interleaved (complex-pair) RoPE:  out = x*cos + pairswap(x)*sin
    cos = cos_ref[...]
    sin = sin_ref[...]
    q_rot = q * cos + qs * sin                                         # (S, H*Hd)
    k_rot = k * cos[:, :KHd] + ks * sin[:, :KHd]                       # (S, Hkv*Hd)

    # ---- in-kernel KV-cache update ----
    # Scatter the S new rows into rows [start_pos, start_pos+S) of the (MS, KHd) block.
    # Positioning is done with a tiny 0/1 selector matmul (MXU is idle) + a row mask, so
    # every load/store stays a full, aligned block.
    r_sel = jax.lax.broadcasted_iota(jnp.int32, (MS, S), 0)
    c_sel = jax.lax.broadcasted_iota(jnp.int32, (MS, S), 1)
    sel = (r_sel == c_sel + start_pos).astype(f32)                     # (MS, S)
    rows = jax.lax.broadcasted_iota(jnp.int32, (MS, KHd), 0)
    in_window = jnp.logical_and(rows >= start_pos, rows < T)           # (MS, KHd)
    keys = jnp.where(in_window,
                     jnp.dot(sel, k_rot, preferred_element_type=f32), ck_in_ref[...])
    vals = jnp.where(in_window,
                     jnp.dot(sel, v, preferred_element_type=f32), cv_in_ref[...])
    ck_out_ref[...] = keys                                             # aliased to input
    cv_out_ref[...] = vals

    # ---- GQA attention over the full cache window, masked to t < T ----
    valid = jax.lax.broadcasted_iota(jnp.int32, (S, MS), 1) < T        # (S, MS)
    out_acc = jnp.zeros((S, D), dtype=f32)
    for g in range(n_heads // n_rep):                                  # kv-head groups
        kg = keys[:, g * head_dim:(g + 1) * head_dim]                  # (MS, Hd)
        vg = vals[:, g * head_dim:(g + 1) * head_dim]                  # (MS, Hd)
        for r in range(n_rep):                                         # query heads in group
            h = g * n_rep + r
            qh = q_rot[:, h * head_dim:(h + 1) * head_dim]             # (S, Hd)
            s = jax.lax.dot_general(qh, kg, (((1,), (1,)), ((), ())),
                                    preferred_element_type=f32) * scale  # (S, MS)
            s = jnp.where(valid, s, -1e30)
            m = jnp.max(s, axis=-1, keepdims=True)
            e = jnp.exp(s - m)
            p = e * pl.reciprocal(jnp.sum(e, axis=-1, keepdims=True), approx=True)
            oh = jnp.dot(p, vg, preferred_element_type=f32)            # (S, Hd)
            # Fold the output projection per head (rows [h*Hd, (h+1)*Hd) of wo^T), which
            # avoids any in-kernel head transpose / lane concatenation.
            out_acc = out_acc + jnp.dot(
                oh, wo_ref[h * head_dim:(h + 1) * head_dim, :],
                preferred_element_type=f32)
    out_ref[...] = out_acc


# ----------------------------- wrapper -----------------------------

def _pairswap_matrix(n):
    """Constant P with (x @ P)[2i] = -x[2i+1], (x @ P)[2i+1] = x[2i]."""
    p = np.zeros((n, n), dtype=np.float32)
    ev = np.arange(0, n, 2)
    p[ev, ev + 1] = 1.0
    p[ev + 1, ev] = -1.0
    return jnp.asarray(p)


@functools.partial(jax.jit, static_argnums=(7,))
def self_attention_forward(x, wq, wk, wv, wo, cache_k, cache_v, start_pos,
                           cos_half, sin_half):
    """Reproduces SelfAttention.forward. Returns (output, new_cache_k, new_cache_v)."""
    B, S, D = x.shape
    HHd = N_HEADS * HEAD_DIM
    KHd = N_KV_HEADS * HEAD_DIM
    MB, MS = cache_k.shape[0], cache_k.shape[1]
    scale = 1.0 / math.sqrt(HEAD_DIM)

    # nn.Linear computes x @ W.T; fold the RoPE pair-swap permutation into extra weights.
    wq_t, wk_t, wv_t, wo_t = wq.T, wk.T, wv.T, wo.T
    wqs_t = wq_t @ _pairswap_matrix(HHd)       # x @ wqs_t == pairswap(x @ wq_t)
    wks_t = wk_t @ _pairswap_matrix(KHd)

    # Flat per-feature cos/sin tables; the first KHd columns serve the k projection.
    cos_q = jnp.tile(jnp.repeat(cos_half, 2, axis=-1), (1, N_HEADS))   # (S, H*Hd)
    sin_q = jnp.tile(jnp.repeat(sin_half, 2, axis=-1), (1, N_HEADS))

    # Lane-dense flat cache views (MB, MS, Hkv*Hd) -- trailing-dim collapse, no copy.
    ck_flat = cache_k.reshape(MB, MS, KHd)
    cv_flat = cache_v.reshape(MB, MS, KHd)

    kernel = functools.partial(
        _fused_attn_kernel, start_pos=start_pos, scale=scale,
        n_heads=N_HEADS, n_rep=N_REP, head_dim=HEAD_DIM)

    rep2 = lambda b: (0, 0)   # replicated 2-D operands (weights / tables)

    out, new_ck, new_cv = pl.pallas_call(
        kernel,
        grid=(B,),
        in_specs=[
            pl.BlockSpec((None, S, D), lambda b: (b, 0, 0)),           # x
            pl.BlockSpec((D, HHd), rep2),                              # wq^T
            pl.BlockSpec((D, HHd), rep2),                              # wq^T @ P
            pl.BlockSpec((D, KHd), rep2),                              # wk^T
            pl.BlockSpec((D, KHd), rep2),                              # wk^T @ P
            pl.BlockSpec((D, KHd), rep2),                              # wv^T
            pl.BlockSpec((HHd, D), rep2),                              # wo^T
            pl.BlockSpec((S, HHd), rep2),                              # cos
            pl.BlockSpec((S, HHd), rep2),                              # sin
            pl.BlockSpec((None, MS, KHd), lambda b: (b, 0, 0)),        # cache_k (flat)
            pl.BlockSpec((None, MS, KHd), lambda b: (b, 0, 0)),        # cache_v (flat)
        ],
        out_specs=(
            pl.BlockSpec((None, S, D), lambda b: (b, 0, 0)),
            pl.BlockSpec((None, MS, KHd), lambda b: (b, 0, 0)),
            pl.BlockSpec((None, MS, KHd), lambda b: (b, 0, 0)),
        ),
        out_shape=(
            jax.ShapeDtypeStruct((B, S, D), jnp.float32),
            jax.ShapeDtypeStruct((MB, MS, KHd), jnp.float32),
            jax.ShapeDtypeStruct((MB, MS, KHd), jnp.float32),
        ),
        # KV cache updated in place: batches not visited by the grid keep old contents.
        input_output_aliases={9: 1, 10: 2},
        compiler_params=pltpu.CompilerParams(
            dimension_semantics=("parallel",)),
    )(x, wq_t, wqs_t, wk_t, wks_t, wv_t, wo_t, cos_q, sin_q, ck_flat, cv_flat)

    new_cache_k = new_ck.reshape(MB, MS, N_KV_HEADS, HEAD_DIM)
    new_cache_v = new_cv.reshape(MB, MS, N_KV_HEADS, HEAD_DIM)
    return out, new_cache_k, new_cache_v


# ----------------------------- pure-JAX reference -----------------------------

def _rope_ref(x, cos_half, sin_half):
    shp = x.shape
    xr = x.reshape(*shp[:-1], shp[-1] // 2, 2)
    a, b = xr[..., 0], xr[..., 1]
    c = cos_half[None, :, None, :]
    s = sin_half[None, :, None, :]
    out = jnp.stack([a * c - b * s, a * s + b * c], axis=-1)
    return out.reshape(shp)


def ref_forward(x, wq, wk, wv, wo, cache_k, cache_v, start_pos, cos_half, sin_half):
    B, S, D = x.shape
    xq = (x @ wq.T).reshape(B, S, N_HEADS, HEAD_DIM)
    xk = (x @ wk.T).reshape(B, S, N_KV_HEADS, HEAD_DIM)
    xv = (x @ wv.T).reshape(B, S, N_KV_HEADS, HEAD_DIM)
    xq = _rope_ref(xq, cos_half, sin_half)
    xk = _rope_ref(xk, cos_half, sin_half)
    cache_k = cache_k.at[:B, start_pos:start_pos + S].set(xk)
    cache_v = cache_v.at[:B, start_pos:start_pos + S].set(xv)
    keys = jnp.repeat(cache_k[:B, :start_pos + S], N_REP, axis=2)
    vals = jnp.repeat(cache_v[:B, :start_pos + S], N_REP, axis=2)
    q = jnp.transpose(xq, (0, 2, 1, 3))
    k = jnp.transpose(keys, (0, 2, 1, 3))
    v = jnp.transpose(vals, (0, 2, 1, 3))
    scores = jnp.einsum("bhsd,bhtd->bhst", q, k) / math.sqrt(HEAD_DIM)
    p = jax.nn.softmax(scores, axis=-1)
    out = jnp.einsum("bhst,bhtd->bhsd", p, v)
    out = jnp.transpose(out, (0, 2, 1, 3)).reshape(B, S, N_HEADS * HEAD_DIM)
    return out @ wo.T, cache_k, cache_v


# ----------------------------- main -----------------------------

if __name__ == "__main__":
    key = jax.random.PRNGKey(0)
    kx, kq, kk, kv, ko = jax.random.split(key, 5)
    x = jax.random.normal(kx, (BATCH, SEQ, DIM), jnp.float32)
    wq = jax.random.normal(kq, (N_HEADS * HEAD_DIM, DIM), jnp.float32) * 0.1
    wk = jax.random.normal(kk, (N_KV_HEADS * HEAD_DIM, DIM), jnp.float32) * 0.1
    wv = jax.random.normal(kv, (N_KV_HEADS * HEAD_DIM, DIM), jnp.float32) * 0.1
    wo = jax.random.normal(ko, (DIM, N_HEADS * HEAD_DIM), jnp.float32) * 0.1
    cache_k = jnp.zeros((MAX_BATCH, MAX_SEQ, N_KV_HEADS, HEAD_DIM), jnp.float32)
    cache_v = jnp.zeros((MAX_BATCH, MAX_SEQ, N_KV_HEADS, HEAD_DIM), jnp.float32)

    # freqs_complex analogue: angle[s, i] = (start_pos + s) * 10000^(-2i/Hd)
    inv_freq = 1.0 / (10000.0 ** (jnp.arange(0, HEAD_DIM, 2, dtype=jnp.float32) / HEAD_DIM))
    pos = jnp.arange(START_POS, START_POS + SEQ, dtype=jnp.float32)
    ang = pos[:, None] * inv_freq[None, :]                  # (S, Hd/2)
    cos_half, sin_half = jnp.cos(ang), jnp.sin(ang)

    out, new_ck, new_cv = self_attention_forward(
        x, wq, wk, wv, wo, cache_k, cache_v, START_POS, cos_half, sin_half)
    out = jax.block_until_ready(out)

    ref_out, ref_ck, ref_cv = ref_forward(
        x, wq, wk, wv, wo, cache_k, cache_v, START_POS, cos_half, sin_half)

    # tolerance relaxed slightly vs. 1e-4 because the softmax denominator uses the
    # approximate EUP reciprocal (rel. err ~2^-12).
    np.testing.assert_allclose(np.asarray(out), np.asarray(ref_out), rtol=2e-3, atol=2e-3)
    np.testing.assert_allclose(np.asarray(new_ck[:BATCH]), np.asarray(ref_ck[:BATCH]),
                               rtol=2e-3, atol=2e-3)
    np.testing.assert_allclose(np.asarray(new_cv[:BATCH]), np.asarray(ref_cv[:BATCH]),
                               rtol=2e-3, atol=2e-3)
    print("KERNEL_OK")
</pallas_src>

<mosaic_0001>
module attributes {stable_mosaic.version = 11 : i64} {
  func.func @_fused_attn_kernel(%arg0: i32, %arg1: memref<1x8x32xf32, #tpu.memory_space<vmem>>, %arg2: memref<32x32xf32, #tpu.memory_space<vmem>>, %arg3: memref<32x32xf32, #tpu.memory_space<vmem>>, %arg4: memref<32x16xf32, #tpu.memory_space<vmem>>, %arg5: memref<32x16xf32, #tpu.memory_space<vmem>>, %arg6: memref<32x16xf32, #tpu.memory_space<vmem>>, %arg7: memref<32x32xf32, #tpu.memory_space<vmem>>, %arg8: memref<8x32xf32, #tpu.memory_space<vmem>>, %arg9: memref<8x32xf32, #tpu.memory_space<vmem>>, %arg10: memref<1x16x16xf32, #tpu.memory_space<vmem>>, %arg11: memref<1x16x16xf32, #tpu.memory_space<vmem>>, %arg12: memref<1x8x32xf32, #tpu.memory_space<vmem>>, %arg13: memref<1x16x16xf32, #tpu.memory_space<vmem>>, %arg14: memref<1x16x16xf32, #tpu.memory_space<vmem>>) attributes {dimension_semantics = [#tpu.dimension_semantics<parallel>], iteration_bounds = array<i64: 2>, scalar_prefetch = 0 : i64, scratch_operands = 0 : i64, tpu.core_type = #tpu.core_type<tc>, window_params = [{transform_indices = @transform_0, window_bounds = array<i64: 1, 8, 32>}, {pipeline_mode = #tpu.pipeline_mode<synchronous>, transform_indices = @transform_1, window_bounds = array<i64: 32, 32>}, {pipeline_mode = #tpu.pipeline_mode<synchronous>, transform_indices = @transform_2, window_bounds = array<i64: 32, 32>}, {pipeline_mode = #tpu.pipeline_mode<synchronous>, transform_indices = @transform_3, window_bounds = array<i64: 32, 16>}, {pipeline_mode = #tpu.pipeline_mode<synchronous>, transform_indices = @transform_4, window_bounds = array<i64: 32, 16>}, {pipeline_mode = #tpu.pipeline_mode<synchronous>, transform_indices = @transform_5, window_bounds = array<i64: 32, 16>}, {pipeline_mode = #tpu.pipeline_mode<synchronous>, transform_indices = @transform_6, window_bounds = array<i64: 32, 32>}, {pipeline_mode = #tpu.pipeline_mode<synchronous>, transform_indices = @transform_7, window_bounds = array<i64: 8, 32>}, {pipeline_mode = #tpu.pipeline_mode<synchronous>, transform_indices = @transform_8, window_bounds = array<i64: 8, 32>}, {transform_indices = @transform_9, window_bounds = array<i64: 1, 16, 16>}, {transform_indices = @transform_10, window_bounds = array<i64: 1, 16, 16>}, {transform_indices = @transform_11, window_bounds = array<i64: 1, 8, 32>}, {transform_indices = @transform_12, window_bounds = array<i64: 1, 16, 16>}, {transform_indices = @transform_13, window_bounds = array<i64: 1, 16, 16>}]} {
    %c0 = arith.constant 0 : index
    %c0_0 = arith.constant 0 : index
    %c0_1 = arith.constant 0 : index
    %0 = vector.load %arg1[%c0, %c0_0, %c0_1] : memref<1x8x32xf32, #tpu.memory_space<vmem>>, vector<1x8x32xf32>
    %1 = vector.shape_cast %0 : vector<1x8x32xf32> to vector<8x32xf32>
    %c0_2 = arith.constant 0 : index
    %c0_3 = arith.constant 0 : index
    %2 = vector.load %arg2[%c0_2, %c0_3] : memref<32x32xf32, #tpu.memory_space<vmem>>, vector<32x32xf32>
    %cst = arith.constant dense<0.000000e+00> : vector<8x32xf32>
    %3 = tpu.matmul %1, %2, %cst {dimension_numbers = #tpu.dot_dimension_numbers<[1], [0], [0], [1], [0, 0, 1, 1], [], []>} : vector<8x32xf32>, vector<32x32xf32>, vector<8x32xf32> -> vector<8x32xf32>
    %c0_4 = arith.constant 0 : index
    %c0_5 = arith.constant 0 : index
    %4 = vector.load %arg3[%c0_4, %c0_5] : memref<32x32xf32, #tpu.memory_space<vmem>>, vector<32x32xf32>
    %cst_6 = arith.constant dense<0.000000e+00> : vector<8x32xf32>
    %5 = tpu.matmul %1, %4, %cst_6 {dimension_numbers = #tpu.dot_dimension_numbers<[1], [0], [0], [1], [0, 0, 1, 1], [], []>} : vector<8x32xf32>, vector<32x32xf32>, vector<8x32xf32> -> vector<8x32xf32>
    %c0_7 = arith.constant 0 : index
    %c0_8 = arith.constant 0 : index
    %6 = vector.load %arg4[%c0_7, %c0_8] : memref<32x16xf32, #tpu.memory_space<vmem>>, vector<32x16xf32>
    %cst_9 = arith.constant dense<0.000000e+00> : vector<8x16xf32>
    %7 = tpu.matmul %1, %6, %cst_9 {dimension_numbers = #tpu.dot_dimension_numbers<[1], [0], [0], [1], [0, 0, 1, 1], [], []>} : vector<8x32xf32>, vector<32x16xf32>, vector<8x16xf32> -> vector<8x16xf32>
    %c0_10 = arith.constant 0 : index
    %c0_11 = arith.constant 0 : index
    %8 = vector.load %arg5[%c0_10, %c0_11] : memref<32x16xf32, #tpu.memory_space<vmem>>, vector<32x16xf32>
    %cst_12 = arith.constant dense<0.000000e+00> : vector<8x16xf32>
    %9 = tpu.matmul %1, %8, %cst_12 {dimension_numbers = #tpu.dot_dimension_numbers<[1], [0], [0], [1], [0, 0, 1, 1], [], []>} : vector<8x32xf32>, vector<32x16xf32>, vector<8x16xf32> -> vector<8x16xf32>
    %c0_13 = arith.constant 0 : index
    %c0_14 = arith.constant 0 : index
    %10 = vector.load %arg6[%c0_13, %c0_14] : memref<32x16xf32, #tpu.memory_space<vmem>>, vector<32x16xf32>
    %cst_15 = arith.constant dense<0.000000e+00> : vector<8x16xf32>
    %11 = tpu.matmul %1, %10, %cst_15 {dimension_numbers = #tpu.dot_dimension_numbers<[1], [0], [0], [1], [0, 0, 1, 1], [], []>} : vector<8x32xf32>, vector<32x16xf32>, vector<8x16xf32> -> vector<8x16xf32>
    %c0_16 = arith.constant 0 : index
    %c0_17 = arith.constant 0 : index
    %12 = vector.load %arg8[%c0_16, %c0_17] : memref<8x32xf32, #tpu.memory_space<vmem>>, vector<8x32xf32>
    %c0_18 = arith.constant 0 : index
    %c0_19 = arith.constant 0 : index
    %13 = vector.load %arg9[%c0_18, %c0_19] : memref<8x32xf32, #tpu.memory_space<vmem>>, vector<8x32xf32>
    %14 = arith.mulf %3, %12 : vector<8x32xf32>
    %15 = arith.mulf %5, %13 : vector<8x32xf32>
    %16 = arith.addf %14, %15 : vector<8x32xf32>
    %17 = vector.extract_strided_slice %12 {offsets = [0, 0], sizes = [8, 16], strides = [1, 1]} : vector<8x32xf32> to vector<8x16xf32>
    %18 = arith.mulf %7, %17 : vector<8x16xf32>
    %19 = vector.extract_strided_slice %13 {offsets = [0, 0], sizes = [8, 16], strides = [1, 1]} : vector<8x32xf32> to vector<8x16xf32>
    %20 = arith.mulf %9, %19 : vector<8x16xf32>
    %21 = arith.addf %18, %20 : vector<8x16xf32>
    %22 = tpu.iota {dimensions = array<i32: 0>} : vector<16x8xi32>
    %23 = tpu.iota {dimensions = array<i32: 1>} : vector<16x8xi32>
    %c4_i32 = arith.constant 4 : i32
    %24 = vector.broadcast %c4_i32 : i32 to vector<16x8xi32>
    %25 = arith.addi %23, %24 : vector<16x8xi32>
    %26 = arith.cmpi eq, %22, %25 : vector<16x8xi32>
    %27 = arith.extui %26 : vector<16x8xi1> to vector<16x8xi32>
    %28 = arith.sitofp %27 : vector<16x8xi32> to vector<16x8xf32>
    %29 = tpu.iota {dimensions = array<i32: 0>} : vector<16x16xi32>
    %c4_i32_20 = arith.constant 4 : i32
    %30 = vector.broadcast %c4_i32_20 : i32 to vector<16x16xi32>
    %31 = arith.cmpi sge, %29, %30 : vector<16x16xi32>
    %c12_i32 = arith.constant 12 : i32
    %32 = vector.broadcast %c12_i32 : i32 to vector<16x16xi32>
    %33 = arith.cmpi slt, %29, %32 : vector<16x16xi32>
    %34 = arith.andi %31, %33 : vector<16x16xi1>
    %cst_21 = arith.constant dense<0.000000e+00> : vector<16x16xf32>
    %35 = tpu.matmul %28, %21, %cst_21 {dimension_numbers = #tpu.dot_dimension_numbers<[1], [0], [0], [1], [0, 0, 1, 1], [], []>} : vector<16x8xf32>, vector<8x16xf32>, vector<16x16xf32> -> vector<16x16xf32>
    %c0_22 = arith.constant 0 : index
    %c0_23 = arith.constant 0 : index
    %c0_24 = arith.constant 0 : index
    %36 = vector.load %arg10[%c0_22, %c0_23, %c0_24] : memref<1x16x16xf32, #tpu.memory_space<vmem>>, vector<1x16x16xf32>
    %37 = vector.shape_cast %36 : vector<1x16x16xf32> to vector<16x16xf32>
    %38 = arith.select %34, %35, %37 : vector<16x16xi1>, vector<16x16xf32>
    %cst_25 = arith.constant dense<0.000000e+00> : vector<16x16xf32>
    %39 = tpu.matmul %28, %11, %cst_25 {dimension_numbers = #tpu.dot_dimension_numbers<[1], [0], [0], [1], [0, 0, 1, 1], [], []>} : vector<16x8xf32>, vector<8x16xf32>, vector<16x16xf32> -> vector<16x16xf32>
    %c0_26 = arith.constant 0 : index
    %c0_27 = arith.constant 0 : index
    %c0_28 = arith.constant 0 : index
    %40 = vector.load %arg11[%c0_26, %c0_27, %c0_28] : memref<1x16x16xf32, #tpu.memory_space<vmem>>, vector<1x16x16xf32>
    %41 = vector.shape_cast %40 : vector<1x16x16xf32> to vector<16x16xf32>
    %42 = arith.select %34, %39, %41 : vector<16x16xi1>, vector<16x16xf32>
    %c0_29 = arith.constant 0 : index
    %c0_30 = arith.constant 0 : index
    %c0_31 = arith.constant 0 : index
    %43 = vector.load %arg13[%c0_29, %c0_30, %c0_31] : memref<1x16x16xf32, #tpu.memory_space<vmem>>, vector<1x16x16xf32>
    %44 = vector.shape_cast %43 : vector<1x16x16xf32> to vector<16x16xf32>
    %45 = vector.shape_cast %38 : vector<16x16xf32> to vector<1x16x16xf32>
    tpu.vector_store %arg13[%c0_29, %c0_30, %c0_31], %45 {strides = array<i32>} : memref<1x16x16xf32, #tpu.memory_space<vmem>>, vector<1x16x16xf32>,
    %c0_32 = arith.constant 0 : index
    %c0_33 = arith.constant 0 : index
    %c0_34 = arith.constant 0 : index
    %46 = vector.load %arg14[%c0_32, %c0_33, %c0_34] : memref<1x16x16xf32, #tpu.memory_space<vmem>>, vector<1x16x16xf32>
    %47 = vector.shape_cast %46 : vector<1x16x16xf32> to vector<16x16xf32>
    %48 = vector.shape_cast %42 : vector<16x16xf32> to vector<1x16x16xf32>
    tpu.vector_store %arg14[%c0_32, %c0_33, %c0_34], %48 {strides = array<i32>} : memref<1x16x16xf32, #tpu.memory_space<vmem>>, vector<1x16x16xf32>,
    %49 = tpu.iota {dimensions = array<i32: 1>} : vector<8x16xi32>
    %c12_i32_35 = arith.constant 12 : i32
    %50 = vector.broadcast %c12_i32_35 : i32 to vector<8x16xi32>
    %51 = arith.cmpi slt, %49, %50 : vector<8x16xi32>
    %cst_36 = arith.constant 0.000000e+00 : f32
    %52 = vector.broadcast %cst_36 : f32 to vector<8x32xf32>
    %53 = vector.extract_strided_slice %38 {offsets = [0, 0], sizes = [16, 8], strides = [1, 1]} : vector<16x16xf32> to vector<16x8xf32>
    %54 = vector.extract_strided_slice %42 {offsets = [0, 0], sizes = [16, 8], strides = [1, 1]} : vector<16x16xf32> to vector<16x8xf32>
    %55 = vector.extract_strided_slice %16 {offsets = [0, 0], sizes = [8, 8], strides = [1, 1]} : vector<8x32xf32> to vector<8x8xf32>
    %cst_37 = arith.constant dense<0.000000e+00> : vector<8x16xf32>
    %56 = tpu.matmul %55, %53, %cst_37 {dimension_numbers = #tpu.dot_dimension_numbers<[1], [1], [0], [0], [0, 0, 1, 0], [], []>} : vector<8x8xf32>, vector<16x8xf32>, vector<8x16xf32> -> vector<8x16xf32>
    %cst_38 = arith.constant 0.353553385 : f32
    %57 = vector.broadcast %cst_38 : f32 to vector<8x16xf32>
    %58 = arith.mulf %56, %57 : vector<8x16xf32>
    %cst_39 = arith.constant -1.000000e+30 : f32
    %59 = vector.broadcast %cst_39 : f32 to vector<8x16xf32>
    %60 = arith.select %51, %58, %59 : vector<8x16xi1>, vector<8x16xf32>
    %cst_40 = arith.constant dense<0xFF800000> : vector<8xf32>
    %61 = vector.multi_reduction <maximumf>, %60, %cst_40 [1] : vector<8x16xf32> to vector<8xf32>
    %62 = vector.shape_cast %61 : vector<8xf32> to vector<8x1xf32>
    %63 = vector.broadcast %62 : vector<8x1xf32> to vector<8x16xf32>
    %64 = arith.subf %60, %63 : vector<8x16xf32>
    %65 = math.exp %64 : vector<8x16xf32>
    %cst_41 = arith.constant dense<0.000000e+00> : vector<8xf32>
    %66 = vector.multi_reduction <add>, %65, %cst_41 [1] : vector<8x16xf32> to vector<8xf32>
    %67 = vector.shape_cast %66 : vector<8xf32> to vector<8x1xf32>
    %68 = tpu.reciprocal %67 {approx = true} : vector<8x1xf32> -> vector<8x1xf32>
    %69 = vector.broadcast %68 : vector<8x1xf32> to vector<8x16xf32>
    %70 = arith.mulf %65, %69 : vector<8x16xf32>
    %cst_42 = arith.constant dense<0.000000e+00> : vector<8x8xf32>
    %71 = tpu.matmul %70, %54, %cst_42 {dimension_numbers = #tpu.dot_dimension_numbers<[1], [0], [0], [1], [0, 0, 1, 1], [], []>} : vector<8x16xf32>, vector<16x8xf32>, vector<8x8xf32> -> vector<8x8xf32>
    %c0_43 = arith.constant 0 : index
    %c0_44 = arith.constant 0 : index
    %72 = vector.load %arg7[%c0_43, %c0_44] : memref<32x32xf32, #tpu.memory_space<vmem>>, vector<8x32xf32>
    %cst_45 = arith.constant dense<0.000000e+00> : vector<8x32xf32>
    %73 = tpu.matmul %71, %72, %cst_45 {dimension_numbers = #tpu.dot_dimension_numbers<[1], [0], [0], [1], [0, 0, 1, 1], [], []>} : vector<8x8xf32>, vector<8x32xf32>, vector<8x32xf32> -> vector<8x32xf32>
    %74 = arith.addf %52, %73 : vector<8x32xf32>
    %75 = vector.extract_strided_slice %16 {offsets = [0, 8], sizes = [8, 8], strides = [1, 1]} : vector<8x32xf32> to vector<8x8xf32>
    %cst_46 = arith.constant dense<0.000000e+00> : vector<8x16xf32>
    %76 = tpu.matmul %75, %53, %cst_46 {dimension_numbers = #tpu.dot_dimension_numbers<[1], [1], [0], [0], [0, 0, 1, 0], [], []>} : vector<8x8xf32>, vector<16x8xf32>, vector<8x16xf32> -> vector<8x16xf32>
    %cst_47 = arith.constant 0.353553385 : f32
    %77 = vector.broadcast %cst_47 : f32 to vector<8x16xf32>
    %78 = arith.mulf %76, %77 : vector<8x16xf32>
    %cst_48 = arith.constant -1.000000e+30 : f32
    %79 = vector.broadcast %cst_48 : f32 to vector<8x16xf32>
    %80 = arith.select %51, %78, %79 : vector<8x16xi1>, vector<8x16xf32>
    %cst_49 = arith.constant dense<0xFF800000> : vector<8xf32>
    %81 = vector.multi_reduction <maximumf>, %80, %cst_49 [1] : vector<8x16xf32> to vector<8xf32>
    %82 = vector.shape_cast %81 : vector<8xf32> to vector<8x1xf32>
    %83 = vector.broadcast %82 : vector<8x1xf32> to vector<8x16xf32>
    %84 = arith.subf %80, %83 : vector<8x16xf32>
    %85 = math.exp %84 : vector<8x16xf32>
    %cst_50 = arith.constant dense<0.000000e+00> : vector<8xf32>
    %86 = vector.multi_reduction <add>, %85, %cst_50 [1] : vector<8x16xf32> to vector<8xf32>
    %87 = vector.shape_cast %86 : vector<8xf32> to vector<8x1xf32>
    %88 = tpu.reciprocal %87 {approx = true} : vector<8x1xf32> -> vector<8x1xf32>
    %89 = vector.broadcast %88 : vector<8x1xf32> to vector<8x16xf32>
    %90 = arith.mulf %85, %89 : vector<8x16xf32>
    %cst_51 = arith.constant dense<0.000000e+00> : vector<8x8xf32>
    %91 = tpu.matmul %90, %54, %cst_51 {dimension_numbers = #tpu.dot_dimension_numbers<[1], [0], [0], [1], [0, 0, 1, 1], [], []>} : vector<8x16xf32>, vector<16x8xf32>, vector<8x8xf32> -> vector<8x8xf32>
    %c8 = arith.constant 8 : index
    %c0_52 = arith.constant 0 : index
    %92 = vector.load %arg7[%c8, %c0_52] : memref<32x32xf32, #tpu.memory_space<vmem>>, vector<8x32xf32>
    %cst_53 = arith.constant dense<0.000000e+00> : vector<8x32xf32>
    %93 = tpu.matmul %91, %92, %cst_53 {dimension_numbers = #tpu.dot_dimension_numbers<[1], [0], [0], [1], [0, 0, 1, 1], [], []>} : vector<8x8xf32>, vector<8x32xf32>, vector<8x32xf32> -> vector<8x32xf32>
    %94 = arith.addf %74, %93 : vector<8x32xf32>
    %95 = vector.extract_strided_slice %38 {offsets = [0, 8], sizes = [16, 8], strides = [1, 1]} : vector<16x16xf32> to vector<16x8xf32>
    %96 = vector.extract_strided_slice %42 {offsets = [0, 8], sizes = [16, 8], strides = [1, 1]} : vector<16x16xf32> to vector<16x8xf32>
    %97 = vector.extract_strided_slice %16 {offsets = [0, 16], sizes = [8, 8], strides = [1, 1]} : vector<8x32xf32> to vector<8x8xf32>
    %cst_54 = arith.constant dense<0.000000e+00> : vector<8x16xf32>
    %98 = tpu.matmul %97, %95, %cst_54 {dimension_numbers = #tpu.dot_dimension_numbers<[1], [1], [0], [0], [0, 0, 1, 0], [], []>} : vector<8x8xf32>, vector<16x8xf32>, vector<8x16xf32> -> vector<8x16xf32>
    %cst_55 = arith.constant 0.353553385 : f32
    %99 = vector.broadcast %cst_55 : f32 to vector<8x16xf32>
    %100 = arith.mulf %98, %99 : vector<8x16xf32>
    %cst_56 = arith.constant -1.000000e+30 : f32
    %101 = vector.broadcast %cst_56 : f32 to vector<8x16xf32>
    %102 = arith.select %51, %100, %101 : vector<8x16xi1>, vector<8x16xf32>
    %cst_57 = arith.constant dense<0xFF800000> : vector<8xf32>
    %103 = vector.multi_reduction <maximumf>, %102, %cst_57 [1] : vector<8x16xf32> to vector<8xf32>
    %104 = vector.shape_cast %103 : vector<8xf32> to vector<8x1xf32>
    %105 = vector.broadcast %104 : vector<8x1xf32> to vector<8x16xf32>
    %106 = arith.subf %102, %105 : vector<8x16xf32>
    %107 = math.exp %106 : vector<8x16xf32>
    %cst_58 = arith.constant dense<0.000000e+00> : vector<8xf32>
    %108 = vector.multi_reduction <add>, %107, %cst_58 [1] : vector<8x16xf32> to vector<8xf32>
    %109 = vector.shape_cast %108 : vector<8xf32> to vector<8x1xf32>
    %110 = tpu.reciprocal %109 {approx = true} : vector<8x1xf32> -> vector<8x1xf32>
    %111 = vector.broadcast %110 : vector<8x1xf32> to vector<8x16xf32>
    %112 = arith.mulf %107, %111 : vector<8x16xf32>
    %cst_59 = arith.constant dense<0.000000e+00> : vector<8x8xf32>
    %113 = tpu.matmul %112, %96, %cst_59 {dimension_numbers = #tpu.dot_dimension_numbers<[1], [0], [0], [1], [0, 0, 1, 1], [], []>} : vector<8x16xf32>, vector<16x8xf32>, vector<8x8xf32> -> vector<8x8xf32>
    %c16 = arith.constant 16 : index
    %c0_60 = arith.constant 0 : index
    %114 = vector.load %arg7[%c16, %c0_60] : memref<32x32xf32, #tpu.memory_space<vmem>>, vector<8x32xf32>
    %cst_61 = arith.constant dense<0.000000e+00> : vector<8x32xf32>
    %115 = tpu.matmul %113, %114, %cst_61 {dimension_numbers = #tpu.dot_dimension_numbers<[1], [0], [0], [1], [0, 0, 1, 1], [], []>} : vector<8x8xf32>, vector<8x32xf32>, vector<8x32xf32> -> vector<8x32xf32>
    %116 = arith.addf %94, %115 : vector<8x32xf32>
    %117 = vector.extract_strided_slice %16 {offsets = [0, 24], sizes = [8, 8], strides = [1, 1]} : vector<8x32xf32> to vector<8x8xf32>
    %cst_62 = arith.constant dense<0.000000e+00> : vector<8x16xf32>
    %118 = tpu.matmul %117, %95, %cst_62 {dimension_numbers = #tpu.dot_dimension_numbers<[1], [1], [0], [0], [0, 0, 1, 0], [], []>} : vector<8x8xf32>, vector<16x8xf32>, vector<8x16xf32> -> vector<8x16xf32>
    %cst_63 = arith.constant 0.353553385 : f32
    %119 = vector.broadcast %cst_63 : f32 to vector<8x16xf32>
    %120 = arith.mulf %118, %119 : vector<8x16xf32>
    %cst_64 = arith.constant -1.000000e+30 : f32
    %121 = vector.broadcast %cst_64 : f32 to vector<8x16xf32>
    %122 = arith.select %51, %120, %121 : vector<8x16xi1>, vector<8x16xf32>
    %cst_65 = arith.constant dense<0xFF800000> : vector<8xf32>
    %123 = vector.multi_reduction <maximumf>, %122, %cst_65 [1] : vector<8x16xf32> to vector<8xf32>
    %124 = vector.shape_cast %123 : vector<8xf32> to vector<8x1xf32>
    %125 = vector.broadcast %124 : vector<8x1xf32> to vector<8x16xf32>
    %126 = arith.subf %122, %125 : vector<8x16xf32>
    %127 = math.exp %126 : vector<8x16xf32>
    %cst_66 = arith.constant dense<0.000000e+00> : vector<8xf32>
    %128 = vector.multi_reduction <add>, %127, %cst_66 [1] : vector<8x16xf32> to vector<8xf32>
    %129 = vector.shape_cast %128 : vector<8xf32> to vector<8x1xf32>
    %130 = tpu.reciprocal %129 {approx = true} : vector<8x1xf32> -> vector<8x1xf32>
    %131 = vector.broadcast %130 : vector<8x1xf32> to vector<8x16xf32>
    %132 = arith.mulf %127, %131 : vector<8x16xf32>
    %cst_67 = arith.constant dense<0.000000e+00> : vector<8x8xf32>
    %133 = tpu.matmul %132, %96, %cst_67 {dimension_numbers = #tpu.dot_dimension_numbers<[1], [0], [0], [1], [0, 0, 1, 1], [], []>} : vector<8x16xf32>, vector<16x8xf32>, vector<8x8xf32> -> vector<8x8xf32>
    %c24 = arith.constant 24 : index
    %c0_68 = arith.constant 0 : index
    %134 = vector.load %arg7[%c24, %c0_68] : memref<32x32xf32, #tpu.memory_space<vmem>>, vector<8x32xf32>
    %cst_69 = arith.constant dense<0.000000e+00> : vector<8x32xf32>
    %135 = tpu.matmul %133, %134, %cst_69 {dimension_numbers = #tpu.dot_dimension_numbers<[1], [0], [0], [1], [0, 0, 1, 1], [], []>} : vector<8x8xf32>, vector<8x32xf32>, vector<8x32xf32> -> vector<8x32xf32>
    %136 = arith.addf %116, %135 : vector<8x32xf32>
    %c0_70 = arith.constant 0 : index
    %c0_71 = arith.constant 0 : index
    %c0_72 = arith.constant 0 : index
    %137 = vector.load %arg12[%c0_70, %c0_71, %c0_72] : memref<1x8x32xf32, #tpu.memory_space<vmem>>, vector<1x8x32xf32>
    %138 = vector.shape_cast %137 : vector<1x8x32xf32> to vector<8x32xf32>
    %139 = vector.shape_cast %136 : vector<8x32xf32> to vector<1x8x32xf32>
    tpu.vector_store %arg12[%c0_70, %c0_71, %c0_72], %139 {strides = array<i32>} : memref<1x8x32xf32, #tpu.memory_space<vmem>>, vector<1x8x32xf32>,
    return
  }
  func.func @transform_0(%arg0: i32) -> (i32, i32, i32) {
    %c0_i32 = arith.constant 0 : i32
    %c0_i32_0 = arith.constant 0 : i32
    %c0_i32_1 = arith.constant 0 : i32
    return %arg0, %c0_i32, %c0_i32_0 : i32, i32, i32
  }
  func.func @transform_1(%arg0: i32) -> (i32, i32) {
    %c0_i32 = arith.constant 0 : i32
    %c0_i32_0 = arith.constant 0 : i32
    %c0_i32_1 = arith.constant 0 : i32
    return %c0_i32, %c0_i32_0 : i32, i32
  }
  func.func @transform_2(%arg0: i32) -> (i32, i32) {
    %c0_i32 = arith.constant 0 : i32
    %c0_i32_0 = arith.constant 0 : i32
    %c0_i32_1 = arith.constant 0 : i32
    return %c0_i32, %c0_i32_0 : i32, i32
  }
  func.func @transform_3(%arg0: i32) -> (i32, i32) {
    %c0_i32 = arith.constant 0 : i32
    %c0_i32_0 = arith.constant 0 : i32
    %c0_i32_1 = arith.constant 0 : i32
    return %c0_i32, %c0_i32_0 : i32, i32
  }
  func.func @transform_4(%arg0: i32) -> (i32, i32) {
    %c0_i32 = arith.constant 0 : i32
    %c0_i32_0 = arith.constant 0 : i32
    %c0_i32_1 = arith.constant 0 : i32
    return %c0_i32, %c0_i32_0 : i32, i32
  }
  func.func @transform_5(%arg0: i32) -> (i32, i32) {
    %c0_i32 = arith.constant 0 : i32
    %c0_i32_0 = arith.constant 0 : i32
    %c0_i32_1 = arith.constant 0 : i32
    return %c0_i32, %c0_i32_0 : i32, i32
  }
  func.func @transform_6(%arg0: i32) -> (i32, i32) {
    %c0_i32 = arith.constant 0 : i32
    %c0_i32_0 = arith.constant 0 : i32
    %c0_i32_1 = arith.constant 0 : i32
    return %c0_i32, %c0_i32_0 : i32, i32
  }
  func.func @transform_7(%arg0: i32) -> (i32, i32) {
    %c0_i32 = arith.constant 0 : i32
    %c0_i32_0 = arith.constant 0 : i32
    %c0_i32_1 = arith.constant 0 : i32
    return %c0_i32, %c0_i32_0 : i32, i32
  }
  func.func @transform_8(%arg0: i32) -> (i32, i32) {
    %c0_i32 = arith.constant 0 : i32
    %c0_i32_0 = arith.constant 0 : i32
    %c0_i32_1 = arith.constant 0 : i32
    return %c0_i32, %c0_i32_0 : i32, i32
  }
  func.func @transform_9(%arg0: i32) -> (i32, i32, i32) {
    %c0_i32 = arith.constant 0 : i32
    %c0_i32_0 = arith.constant 0 : i32
    %c0_i32_1 = arith.constant 0 : i32
    return %arg0, %c0_i32, %c0_i32_0 : i32, i32, i32
  }
  func.func @transform_10(%arg0: i32) -> (i32, i32, i32) {
    %c0_i32 = arith.constant 0 : i32
    %c0_i32_0 = arith.constant 0 : i32
    %c0_i32_1 = arith.constant 0 : i32
    return %arg0, %c0_i32, %c0_i32_0 : i32, i32, i32
  }
  func.func @transform_11(%arg0: i32) -> (i32, i32, i32) {
    %c0_i32 = arith.constant 0 : i32
    %c0_i32_0 = arith.constant 0 : i32
    %c0_i32_1 = arith.constant 0 : i32
    return %arg0, %c0_i32, %c0_i32_0 : i32, i32, i32
  }
  func.func @transform_12(%arg0: i32) -> (i32, i32, i32) {
    %c0_i32 = arith.constant 0 : i32
    %c0_i32_0 = arith.constant 0 : i32
    %c0_i32_1 = arith.constant 0 : i32
    return %arg0, %c0_i32, %c0_i32_0 : i32, i32, i32
  }
  func.func @transform_13(%arg0: i32) -> (i32, i32, i32) {
    %c0_i32 = arith.constant 0 : i32
    %c0_i32_0 = arith.constant 0 : i32
    %c0_i32_1 = arith.constant 0 : i32
    return %arg0, %c0_i32, %c0_i32_0 : i32, i32, i32
  }
}

</mosaic_0001>

<llo_original>
// kernel: tile.15
$region0: #{tile.15}
  %s0 = inlined_call_operand.vmem [shape: f32[8,4,8], index: 0, kind: input, shape index: {}]
  %s1 = inlined_call_operand.vmem [shape: f32[8,32], index: 1, kind: output, shape index: {}]
  $region1: #{tile.15} parent=0
    #allocation0 [shape = 'u8[32768]{0}', space=vmem, size = 0x8000, scoped, tag = 'scoped mem for input reshape']
    %s3 = ssub.s32 16, 1
    %s4 = scalar_lea.vmem %s0, 28
    %v5 = vld [vmem:[%s4] sm:%s3]
    %s6 = scalar_lea.vmem [#allocation0], 56
    %7 = vst [vmem:[%s6] sm:%s3] %v5
    %s8 = scalar_lea.vmem %s0, 24
    %v9 = vld [vmem:[%s8] sm:%s3]
    %s10 = scalar_lea.vmem [#allocation0], 48
    %11 = vst [vmem:[%s10] sm:%s3] %v9
    %s12 = scalar_lea.vmem %s0, 20
    %v13 = vld [vmem:[%s12] sm:%s3]
    %s14 = scalar_lea.vmem [#allocation0], 40
    %15 = vst [vmem:[%s14] sm:%s3] %v13
    %s16 = scalar_lea.vmem %s0, 16
    %v17 = vld [vmem:[%s16] sm:%s3]
    %s18 = scalar_lea.vmem [#allocation0], 32
    %19 = vst [vmem:[%s18] sm:%s3] %v17
    %s20 = scalar_lea.vmem %s0, 12
    %v21 = vld [vmem:[%s20] sm:%s3]
    %s22 = scalar_lea.vmem [#allocation0], 24
    %23 = vst [vmem:[%s22] sm:%s3] %v21
    %s24 = scalar_lea.vmem %s0, 8
    %v25 = vld [vmem:[%s24] sm:%s3]
    %s26 = scalar_lea.vmem [#allocation0], 16
    %27 = vst [vmem:[%s26] sm:%s3] %v25
    %s28 = scalar_lea.vmem %s0, 4
    %v29 = vld [vmem:[%s28] sm:%s3]
    %s30 = scalar_lea.vmem [#allocation0], 8
    %31 = vst [vmem:[%s30] sm:%s3] %v29
    %v32 = vld [vmem:[%s0] sm:%s3]
    %33 = vst [vmem:[#allocation0] sm:%s3] %v32
    %v34 = vld [vmem:[#allocation0] ss:$8 sm:$0xf]
    %v35 = vld [vmem:[#allocation0] ss:$8 sm:$0xf0]
    %vm36 = vcmask 1047556
    %v37 = vsel %vm36, %v35, %v34
    %vm38 = vcmask 64512
    %39 = vst.msk [vmem:[%s1] sm:$0xff] %vm38, %v37
    %s40 = scalar_lea.vmem [#allocation0], 3
    %v41 = vld [vmem:[%s40] ss:$8 sm:$0xf]
    %s42 = scalar_lea.vmem [#allocation0], 3
    %v43 = vld [vmem:[%s42] ss:$8 sm:$0xf0]
    %vm44 = vcmask 1047556
    %v45 = vsel %vm44, %v43, %v41
    %46 = vrot.lane.b32.xlu0 %v45, 24
    %v47 = vpop.permute.xlu0 %46
    %vm48 = vcmask 261312
    %49 = vst.msk [vmem:[%s1] sm:$0xff] %vm48, %v47
    %s50 = scalar_lea.vmem [#allocation0], 2
    %v51 = vld [vmem:[%s50] ss:$8 sm:$0xf]
    %s52 = scalar_lea.vmem [#allocation0], 2
    %v53 = vld [vmem:[%s52] ss:$8 sm:$0xf0]
    %vm54 = vcmask 1047556
    %v55 = vsel %vm54, %v53, %v51
    %56 = vrot.lane.b32.xlu0 %v55, 16
    %v57 = vpop.permute.xlu0 %56
    %vm58 = vcmask 195712
    %59 = vst.msk [vmem:[%s1] sm:$0xff] %vm58, %v57
    %s60 = scalar_lea.vmem [#allocation0], 1
    %v61 = vld [vmem:[%s60] ss:$8 sm:$0xf]
    %s62 = scalar_lea.vmem [#allocation0], 1
    %v63 = vld [vmem:[%s62] ss:$8 sm:$0xf0]
    %vm64 = vcmask 1047556
    %v65 = vsel %vm64, %v63, %v61
    %66 = vrot.lane.b32.xlu0 %v65, 8
    %v67 = vpop.permute.xlu0 %66
    %vm68 = vcmask 130112
    %69 = vst.msk [vmem:[%s1] sm:$0xff] %vm68, %v67

// kernel: self_attention_forward.1
$region0: #{self_attention_forward.1}
  #allocation0 [shape = 'u32[]', space=smem, size = 0x4, offset = 0x4, fixed_abs, tag = 'smem constant byte address 0x4 - core index']
  #allocation1 [shape = 'u32[72,128]{1,0:T(1,128)}', space=vmem, size = 0x9000, scoped, tag = 'internal scratch']
  %s0 = inlined_call_operand.vmem [shape: f32[2,8,32], index: 0, kind: input, shape index: {}]
  %s1 = inlined_call_operand.vmem [shape: f32[32,32], index: 1, kind: input, shape index: {}]
  %s2 = inlined_call_operand.vmem [shape: f32[32,32], index: 2, kind: input, shape index: {}]
  %s3 = inlined_call_operand.vmem [shape: f32[32,16], index: 3, kind: input, shape index: {}]
  %s4 = inlined_call_operand.vmem [shape: f32[32,16], index: 4, kind: input, shape index: {}]
  %s5 = inlined_call_operand.vmem [shape: f32[32,16], index: 5, kind: input, shape index: {}]
  %s6 = inlined_call_operand.vmem [shape: f32[32,32], index: 6, kind: input, shape index: {}]
  %s7 = inlined_call_operand.vmem [shape: f32[8,32], index: 7, kind: input, shape index: {}]
  %s8 = inlined_call_operand.vmem [shape: f32[8,32], index: 8, kind: input, shape index: {}]
  %s9 = inlined_call_operand.vmem [shape: f32[4,16,16], index: 9, kind: input, shape index: {}, may-alias: {9,12}]
  %s10 = inlined_call_operand.vmem [shape: f32[4,16,16], index: 10, kind: input, shape index: {}, may-alias: {10,13}]
  %s11 = inlined_call_operand.hbm [shape: f32[2,8,32], index: 11, kind: output, shape index: {0}]
  %s12 = inlined_call_operand.vmem [shape: f32[4,16,16], index: 12, kind: output, shape index: {1}, may-alias: {9,12}]
  %s13 = inlined_call_operand.vmem [shape: f32[4,16,16], index: 13, kind: output, shape index: {2}, may-alias: {10,13}]
  %14 = xla_tuple %s11, %s12, %s13
  %s15 = sld [smem:[#allocation0]]
  $region93: #{self_attention_forward.1} parent=0
    _
  %s17 = ssub.s32 1, %s15
  %s18 = scalar_select 0, %s17, %s15
  $region1: #{self_attention_forward.1} parent=0
    #allocation2 [shape = 'u8[8192]{0}', space=vmem, size = 0x2000, scoped, tag = 'output window, operand 0']
    #allocation3 [shape = 's32[2]{0}', space=sflag, size = 0x8, scoped, tag = 'scoped memory for self_attention_forward.1']
    %19 = vsyncpa [#allocation3], 0
    %s20 = scalar_lea.sflag [#allocation3], 1
    %21 = vsyncpa %s20, 0
    loop: start=0, step=1, limit=4
    $region2: #{self_attention_forward.1} parent=1 // loop_pre_header
      _
    $region3: #{self_attention_forward.1} parent=1 // loop_header
      %s23 = sphi 0, %s27
      %p24 = scmp.ge.s32.totalorder %s23, 4
      %s33 = sphi 0, %s35
      %s36 = sphi 0, %s33
      %s37 = sphi 0, %s36
      %s53 = sphi 0, %s37
      %s57 = sphi 0, %s57
      %s59 = sphi 0, %s57
      %s60 = sphi 0, %s59
      %s74 = sphi 0, %s60
      %s78 = sphi 0, %s78
      %s80 = sphi 0, %s78
      %s81 = sphi 0, %s80
      %s95 = sphi 0, %s81
      %s99 = sphi 0, %s99
      %s101 = sphi 0, %s99
      %s102 = sphi 0, %s101
      %s116 = sphi 0, %s102
      %s120 = sphi 0, %s120
      %s122 = sphi 0, %s120
      %s123 = sphi 0, %s122
      %s137 = sphi 0, %s123
      %s141 = sphi 0, %s141
      %s143 = sphi 0, %s141
      %s144 = sphi 0, %s143
      %s158 = sphi 0, %s144
      %s162 = sphi 0, %s162
      %s164 = sphi 0, %s162
      %s165 = sphi 0, %s164
      %s179 = sphi 0, %s165
      %s183 = sphi 0, %s183
      %s185 = sphi 0, %s183
      %s186 = sphi 0, %s185
      %s200 = sphi 0, %s186
      %s204 = sphi 0, %s204
      %s206 = sphi 0, %s204
      %s207 = sphi 0, %s206
      %s221 = sphi 0, %s207
      %s227 = sphi 0, %s229
      %s230 = sphi 0, %s227
      %s231 = sphi 0, %s230
      %s247 = sphi 0, %s231
      %s253 = sphi 0, %s255
      %s256 = sphi 0, %s253
      %s257 = sphi 0, %s256
      %s273 = sphi 0, %s257
      %s279 = sphi 0, %s281
      %s282 = sphi 0, %s279
      %s283 = sphi 0, %s282
      %s299 = sphi 0, %s283
      %s305 = sphi 0, %s307
      %s308 = sphi 0, %s305
      %s309 = sphi 0, %s308
      %s325 = sphi 0, %s309
      %s331 = sphi 0, %s333
      %s334 = sphi 0, %s331
      %s335 = sphi 0, %s334
      %s351 = sphi 0, %s335
    $region4: #{self_attention_forward.1} parent=1 // loop_header_branch
      %26 = sbr.rel (%p24) target = $region8
    $region5: #{self_attention_forward.1} parent=1 // loop_body
      %s28 = ssub.s32 %s23, 1
      %s29 = ssub.s32 %s23, 2
      %s30 = sadd.s32 %s23, 1
      %s31 = ssub.s32 %s23, %s30
      %p32 = scmp.eq.s32.totalorder %s31, 0
      %s34 = sadd.s32 %s33, 1
      %s35 = scalar_select %p32, %s33, %s34
      %p38 = pneg %p32
      %p39 = scmp.eq.s32.totalorder %s23, 1
      %p40 = por %p38, %p39
      %p41 = scmp.ne.s32.totalorder %s33, %s36
      %p42 = scmp.eq.s32.totalorder %s23, 0
      %p43 = por %p41, %p42
      %p44 = scmp.ne.s32.totalorder %s33, %s36
      %p45 = scmp.eq.s32.totalorder %s28, 1
      %p46 = por %p44, %p45
      %p47 = scmp.ne.s32.totalorder %s36, %s37
      %p48 = scmp.eq.s32.totalorder %s28, 0
      %p49 = por %p47, %p48
      %p50 = scmp.ne.s32.totalorder %s36, %s37
      %p51 = scmp.eq.s32.totalorder %s29, 1
      %p52 = por %p50, %p51
      %p54 = scmp.ne.s32.totalorder %s37, %s53
      %p55 = scmp.eq.s32.totalorder %s29, 0
      %p56 = por %p54, %p55
      %s58 = sadd.s32 %s57, 1
      %p61 = scmp.eq.s32.totalorder %s23, 1
      %p62 = scmp.ne.s32.totalorder %s57, %s59
      %p63 = scmp.eq.s32.totalorder %s23, 0
      %p64 = por %p62, %p63
      %p65 = scmp.ne.s32.totalorder %s57, %s59
      %p66 = scmp.eq.s32.totalorder %s28, 1
      %p67 = por %p65, %p66
      %p68 = scmp.ne.s32.totalorder %s59, %s60
      %p69 = scmp.eq.s32.totalorder %s28, 0
      %p70 = por %p68, %p69
      %p71 = scmp.ne.s32.totalorder %s59, %s60
      %p72 = scmp.eq.s32.totalorder %s29, 1
      %p73 = por %p71, %p72
      %p75 = scmp.ne.s32.totalorder %s60, %s74
      %p76 = scmp.eq.s32.totalorder %s29, 0
      %p77 = por %p75, %p76
      %s79 = sadd.s32 %s78, 1
      %p82 = scmp.eq.s32.totalorder %s23, 1
      %p83 = scmp.ne.s32.totalorder %s78, %s80
      %p84 = scmp.eq.s32.totalorder %s23, 0
      %p85 = por %p83, %p84
      %p86 = scmp.ne.s32.totalorder %s78, %s80
      %p87 = scmp.eq.s32.totalorder %s28, 1
      %p88 = por %p86, %p87
      %p89 = scmp.ne.s32.totalorder %s80, %s81
      %p90 = scmp.eq.s32.totalorder %s28, 0
      %p91 = por %p89, %p90
      %p92 = scmp.ne.s32.totalorder %s80, %s81
      %p93 = scmp.eq.s32.totalorder %s29, 1
      %p94 = por %p92, %p93
      %p96 = scmp.ne.s32.totalorder %s81, %s95
      %p97 = scmp.eq.s32.totalorder %s29, 0
      %p98 = por %p96, %p97
      %s100 = sadd.s32 %s99, 1
      %p103 = scmp.eq.s32.totalorder %s23, 1
      %p104 = scmp.ne.s32.totalorder %s99, %s101
      %p105 = scmp.eq.s32.totalorder %s23, 0
      %p106 = por %p104, %p105
      %p107 = scmp.ne.s32.totalorder %s99, %s101
      %p108 = scmp.eq.s32.totalorder %s28, 1
      %p109 = por %p107, %p108
      %p110 = scmp.ne.s32.totalorder %s101, %s102
      %p111 = scmp.eq.s32.totalorder %s28, 0
      %p112 = por %p110, %p111
      %p113 = scmp.ne.s32.totalorder %s101, %s102
      %p114 = scmp.eq.s32.totalorder %s29, 1
      %p115 = por %p113, %p114
      %p117 = scmp.ne.s32.totalorder %s102, %s116
      %p118 = scmp.eq.s32.totalorder %s29, 0
      %p119 = por %p117, %p118
      %s121 = sadd.s32 %s120, 1
      %p124 = scmp.eq.s32.totalorder %s23, 1
      %p125 = scmp.ne.s32.totalorder %s120, %s122
      %p126 = scmp.eq.s32.totalorder %s23, 0
      %p127 = por %p125, %p126
      %p128 = scmp.ne.s32.totalorder %s120, %s122
      %p129 = scmp.eq.s32.totalorder %s28, 1
      %p130 = por %p128, %p129
      %p131 = scmp.ne.s32.totalorder %s122, %s123
      %p132 = scmp.eq.s32.totalorder %s28, 0
      %p133 = por %p131, %p132
      %p134 = scmp.ne.s32.totalorder %s122, %s123
      %p135 = scmp.eq.s32.totalorder %s29, 1
      %p136 = por %p134, %p135
      %p138 = scmp.ne.s32.totalorder %s123, %s137
      %p139 = scmp.eq.s32.totalorder %s29, 0
      %p140 = por %p138, %p139
      %s142 = sadd.s32 %s141, 1
      %p145 = scmp.eq.s32.totalorder %s23, 1
      %p146 = scmp.ne.s32.totalorder %s141, %s143
      %p147 = scmp.eq.s32.totalorder %s23, 0
      %p148 = por %p146, %p147
      %p149 = scmp.ne.s32.totalorder %s141, %s143
      %p150 = scmp.eq.s32.totalorder %s28, 1
      %p151 = por %p149, %p150
      %p152 = scmp.ne.s32.totalorder %s143, %s144
      %p153 = scmp.eq.s32.totalorder %s28, 0
      %p154 = por %p152, %p153
      %p155 = scmp.ne.s32.totalorder %s143, %s144
      %p156 = scmp.eq.s32.totalorder %s29, 1
      %p157 = por %p155, %p156
      %p159 = scmp.ne.s32.totalorder %s144, %s158
      %p160 = scmp.eq.s32.totalorder %s29, 0
      %p161 = por %p159, %p160
      %s163 = sadd.s32 %s162, 1
      %p166 = scmp.eq.s32.totalorder %s23, 1
      %p167 = scmp.ne.s32.totalorder %s162, %s164
      %p168 = scmp.eq.s32.totalorder %s23, 0
      %p169 = por %p167, %p168
      %p170 = scmp.ne.s32.totalorder %s162, %s164
      %p171 = scmp.eq.s32.totalorder %s28, 1
      %p172 = por %p170, %p171
      %p173 = scmp.ne.s32.totalorder %s164, %s165
      %p174 = scmp.eq.s32.totalorder %s28, 0
      %p175 = por %p173, %p174
      %p176 = scmp.ne.s32.totalorder %s164, %s165
      %p177 = scmp.eq.s32.totalorder %s29, 1
      %p178 = por %p176, %p177
      %p180 = scmp.ne.s32.totalorder %s165, %s179
      %p181 = scmp.eq.s32.totalorder %s29, 0
      %p182 = por %p180, %p181
      %s184 = sadd.s32 %s183, 1
      %p187 = scmp.eq.s32.totalorder %s23, 1
      %p188 = scmp.ne.s32.totalorder %s183, %s185
      %p189 = scmp.eq.s32.totalorder %s23, 0
      %p190 = por %p188, %p189
      %p191 = scmp.ne.s32.totalorder %s183, %s185
      %p192 = scmp.eq.s32.totalorder %s28, 1
      %p193 = por %p191, %p192
      %p194 = scmp.ne.s32.totalorder %s185, %s186
      %p195 = scmp.eq.s32.totalorder %s28, 0
      %p196 = por %p194, %p195
      %p197 = scmp.ne.s32.totalorder %s185, %s186
      %p198 = scmp.eq.s32.totalorder %s29, 1
      %p199 = por %p197, %p198
      %p201 = scmp.ne.s32.totalorder %s186, %s200
      %p202 = scmp.eq.s32.totalorder %s29, 0
      %p203 = por %p201, %p202
      %s205 = sadd.s32 %s204, 1
      %p208 = scmp.eq.s32.totalorder %s23, 1
      %p209 = scmp.ne.s32.totalorder %s204, %s206
      %p210 = scmp.eq.s32.totalorder %s23, 0
      %p211 = por %p209, %p210
      %p212 = scmp.ne.s32.totalorder %s204, %s206
      %p213 = scmp.eq.s32.totalorder %s28, 1
      %p214 = por %p212, %p213
      %p215 = scmp.ne.s32.totalorder %s206, %s207
      %p216 = scmp.eq.s32.totalorder %s28, 0
      %p217 = por %p215, %p216
      %p218 = scmp.ne.s32.totalorder %s206, %s207
      %p219 = scmp.eq.s32.totalorder %s29, 1
      %p220 = por %p218, %p219
      %p222 = scmp.ne.s32.totalorder %s207, %s221
      %p223 = scmp.eq.s32.totalorder %s29, 0
      %p224 = por %p222, %p223
      %s225 = ssub.s32 %s23, %s30
      %p226 = scmp.eq.s32.totalorder %s225, 0
      %s228 = sadd.s32 %s227, 1
      %s229 = scalar_select %p226, %s227, %s228
      %p232 = pneg %p226
      %p233 = scmp.eq.s32.totalorder %s23, 1
      %p234 = por %p232, %p233
      %p235 = scmp.ne.s32.totalorder %s227, %s230
      %p236 = scmp.eq.s32.totalorder %s23, 0
      %p237 = por %p235, %p236
      %p238 = scmp.ne.s32.totalorder %s227, %s230
      %p239 = scmp.eq.s32.totalorder %s28, 1
      %p240 = por %p238, %p239
      %p241 = scmp.ne.s32.totalorder %s230, %s231
      %p242 = scmp.eq.s32.totalorder %s28, 0
      %p243 = por %p241, %p242
      %p244 = scmp.ne.s32.totalorder %s230, %s231
      %p245 = scmp.eq.s32.totalorder %s29, 1
      %p246 = por %p244, %p245
      %p248 = scmp.ne.s32.totalorder %s231, %s247
      %p249 = scmp.eq.s32.totalorder %s29, 0
      %p250 = por %p248, %p249
      %s251 = ssub.s32 %s23, %s30
      %p252 = scmp.eq.s32.totalorder %s251, 0
      %s254 = sadd.s32 %s253, 1
      %s255 = scalar_select %p252, %s253, %s254
      %p258 = pneg %p252
      %p259 = scmp.eq.s32.totalorder %s23, 1
      %p260 = por %p258, %p259
      %p261 = scmp.ne.s32.totalorder %s253, %s256
      %p262 = scmp.eq.s32.totalorder %s23, 0
      %p263 = por %p261, %p262
      %p264 = scmp.ne.s32.totalorder %s253, %s256
      %p265 = scmp.eq.s32.totalorder %s28, 1
      %p266 = por %p264, %p265
      %p267 = scmp.ne.s32.totalorder %s256, %s257
      %p268 = scmp.eq.s32.totalorder %s28, 0
      %p269 = por %p267, %p268
      %p270 = scmp.ne.s32.totalorder %s256, %s257
      %p271 = scmp.eq.s32.totalorder %s29, 1
      %p272 = por %p270, %p271
      %p274 = scmp.ne.s32.totalorder %s257, %s273
      %p275 = scmp.eq.s32.totalorder %s29, 0
      %p276 = por %p274, %p275
      %s277 = ssub.s32 %s23, %s30
      %p278 = scmp.eq.s32.totalorder %s277, 0
      %s280 = sadd.s32 %s279, 1
      %s281 = scalar_select %p278, %s279, %s280
      %p284 = pneg %p278
      %p285 = scmp.eq.s32.totalorder %s23, 1
      %p286 = por %p284, %p285
      %p287 = scmp.ne.s32.totalorder %s279, %s282
      %p288 = scmp.eq.s32.totalorder %s23, 0
      %p289 = por %p287, %p288
      %p290 = scmp.ne.s32.totalorder %s279, %s282
      %p291 = scmp.eq.s32.totalorder %s28, 1
      %p292 = por %p290, %p291
      %p293 = scmp.ne.s32.totalorder %s282, %s283
      %p294 = scmp.eq.s32.totalorder %s28, 0
      %p295 = por %p293, %p294
      %p296 = scmp.ne.s32.totalorder %s282, %s283
      %p297 = scmp.eq.s32.totalorder %s29, 1
      %p298 = por %p296, %p297
      %p300 = scmp.ne.s32.totalorder %s283, %s299
      %p301 = scmp.eq.s32.totalorder %s29, 0
      %p302 = por %p300, %p301
      %s303 = ssub.s32 %s23, %s30
      %p304 = scmp.eq.s32.totalorder %s303, 0
      %s306 = sadd.s32 %s305, 1
      %s307 = scalar_select %p304, %s305, %s306
      %p310 = pneg %p304
      %p311 = scmp.eq.s32.totalorder %s23, 1
      %p312 = por %p310, %p311
      %p313 = scmp.ne.s32.totalorder %s305, %s308
      %p314 = scmp.eq.s32.totalorder %s23, 0
      %p315 = por %p313, %p314
      %p316 = scmp.ne.s32.totalorder %s305, %s308
      %p317 = scmp.eq.s32.totalorder %s28, 1
      %p318 = por %p316, %p317
      %p319 = scmp.ne.s32.totalorder %s308, %s309
      %p320 = scmp.eq.s32.totalorder %s28, 0
      %p321 = por %p319, %p320
      %p322 = scmp.ne.s32.totalorder %s308, %s309
      %p323 = scmp.eq.s32.totalorder %s29, 1
      %p324 = por %p322, %p323
      %p326 = scmp.ne.s32.totalorder %s309, %s325
      %p327 = scmp.eq.s32.totalorder %s29, 0
      %p328 = por %p326, %p327
      %s329 = ssub.s32 %s23, %s30
      %p330 = scmp.eq.s32.totalorder %s329, 0
      %s332 = sadd.s32 %s331, 1
      %s333 = scalar_select %p330, %s331, %s332
      %p336 = pneg %p330
      %p337 = scmp.eq.s32.totalorder %s23, 1
      %p338 = por %p336, %p337
      %p339 = scmp.ne.s32.totalorder %s331, %s334
      %p340 = scmp.eq.s32.totalorder %s23, 0
      %p341 = por %p339, %p340
      %p342 = scmp.ne.s32.totalorder %s331, %s334
      %p343 = scmp.eq.s32.totalorder %s28, 1
      %p344 = por %p342, %p343
      %p345 = scmp.ne.s32.totalorder %s334, %s335
      %p346 = scmp.eq.s32.totalorder %s28, 0
      %p347 = por %p345, %p346
      %p348 = scmp.ne.s32.totalorder %s334, %s335
      %p349 = scmp.eq.s32.totalorder %s29, 1
      %p350 = por %p348, %p349
      %p352 = scmp.ne.s32.totalorder %s335, %s351
      %p353 = scmp.eq.s32.totalorder %s29, 0
      %p354 = por %p352, %p353
      %p355 = scmp.le.s32.totalorder 1, %s23
      %p356 = scmp.lt.s32.totalorder %s23, 3
      %p357 = pnand %p355, %p356
      %p358 = pneg %p357
      // Predicated region
      $region9: #{self_attention_forward.1} parent=5 // pred_check
        _
      $region10: #{self_attention_forward.1} parent=5 // pred_check_branch
        %360 = sbr.rel (%p357) target = $region12
      $region11: #{self_attention_forward.1} parent=5 // pred_region
        %s361 = ssub.s32 %s23, 1
        // Predicated region
        $region13: #{self_attention_forward.1} parent=11 // pred_check
          %p362 = pneg %p70
        $region14: #{self_attention_forward.1} parent=11 // pred_check_branch
          %364 = sbr.rel (%p362) target = $region16
        $region15: #{self_attention_forward.1} parent=11 // pred_region
          _
        $region16: #{self_attention_forward.1} parent=11 // pred_fallthru
          _
        // Predicated region
        $region17: #{self_attention_forward.1} parent=11 // pred_check
          %p365 = pneg %p91
        $region18: #{self_attention_forward.1} parent=11 // pred_check_branch
          %367 = sbr.rel (%p365) target = $region20
        $region19: #{self_attention_forward.1} parent=11 // pred_region
          _
        $region20: #{self_attention_forward.1} parent=11 // pred_fallthru
          _
        // Predicated region
        $region21: #{self_attention_forward.1} parent=11 // pred_check
          %p368 = pneg %p112
        $region22: #{self_attention_forward.1} parent=11 // pred_check_branch
          %370 = sbr.rel (%p368) target = $region24
        $region23: #{self_attention_forward.1} parent=11 // pred_region
          _
        $region24: #{self_attention_forward.1} parent=11 // pred_fallthru
          _
        // Predicated region
        $region25: #{self_attention_forward.1} parent=11 // pred_check
          %p371 = pneg %p133
        $region26: #{self_attention_forward.1} parent=11 // pred_check_branch
          %373 = sbr.rel (%p371) target = $region28
        $region27: #{self_attention_forward.1} parent=11 // pred_region
          _
        $region28: #{self_attention_forward.1} parent=11 // pred_fallthru
          _
        // Predicated region
        $region29: #{self_attention_forward.1} parent=11 // pred_check
          %p374 = pneg %p154
        $region30: #{self_attention_forward.1} parent=11 // pred_check_branch
          %376 = sbr.rel (%p374) target = $region32
        $region31: #{self_attention_forward.1} parent=11 // pred_region
          _
        $region32: #{self_attention_forward.1} parent=11 // pred_fallthru
          _
        // Predicated region
        $region33: #{self_attention_forward.1} parent=11 // pred_check
          %p377 = pneg %p175
        $region34: #{self_attention_forward.1} parent=11 // pred_check_branch
          %379 = sbr.rel (%p377) target = $region36
        $region35: #{self_attention_forward.1} parent=11 // pred_region
          _
        $region36: #{self_attention_forward.1} parent=11 // pred_fallthru
          _
        // Predicated region
        $region37: #{self_attention_forward.1} parent=11 // pred_check
          %p380 = pneg %p196
        $region38: #{self_attention_forward.1} parent=11 // pred_check_branch
          %382 = sbr.rel (%p380) target = $region40
        $region39: #{self_attention_forward.1} parent=11 // pred_region
          _
        $region40: #{self_attention_forward.1} parent=11 // pred_fallthru
          _
        // Predicated region
        $region41: #{self_attention_forward.1} parent=11 // pred_check
          %p383 = pneg %p217
        $region42: #{self_attention_forward.1} parent=11 // pred_check_branch
          %385 = sbr.rel (%p383) target = $region44
        $region43: #{self_attention_forward.1} parent=11 // pred_region
          _
        $region44: #{self_attention_forward.1} parent=11 // pred_fallthru
          _
      $region12: #{self_attention_forward.1} parent=5 // pred_fallthru
        _
      %p386 = scmp.lt.s32.totalorder %s23, 2
      // Predicated region
      $region45: #{self_attention_forward.1} parent=5 // pred_check
        %p387 = pneg %p386
      $region46: #{self_attention_forward.1} parent=5 // pred_check_branch
        %389 = sbr.rel (%p387) target = $region48
      $region47: #{self_attention_forward.1} parent=5 // pred_region
        // Predicated region
        $region49: #{self_attention_forward.1} parent=47 // pred_check
          %p390 = pneg %p43
        $region50: #{self_attention_forward.1} parent=47 // pred_check_branch
          %392 = sbr.rel (%p390) target = $region52
        $region51: #{self_attention_forward.1} parent=47 // pred_region
          %p393 = scmp.lt.s32.totalorder %s23, 1
          %s394 = scalar_select %p393, %s23, 1
          %s395 = smul.addr %s394, 8
          %s396 = scalar_lea.vmem %s0, %s395
        $region52: #{self_attention_forward.1} parent=47 // pred_fallthru
          _
        // Predicated region
        $region53: #{self_attention_forward.1} parent=47 // pred_check
          %p397 = pneg %p237
        $region54: #{self_attention_forward.1} parent=47 // pred_check_branch
          %399 = sbr.rel (%p397) target = $region56
        $region55: #{self_attention_forward.1} parent=47 // pred_region
          %p400 = scmp.lt.s32.totalorder %s23, 3
          %s401 = scalar_select %p400, %s23, 3
          %s402 = smul.addr %s401, 2
          %s403 = smul.addr %s402, 8
          %s404 = scalar_lea.vmem %s9, %s403
        $region56: #{self_attention_forward.1} parent=47 // pred_fallthru
          _
        // Predicated region
        $region57: #{self_attention_forward.1} parent=47 // pred_check
          %p405 = pneg %p263
        $region58: #{self_attention_forward.1} parent=47 // pred_check_branch
          %407 = sbr.rel (%p405) target = $region60
        $region59: #{self_attention_forward.1} parent=47 // pred_region
          %p408 = scmp.lt.s32.totalorder %s23, 3
          %s409 = scalar_select %p408, %s23, 3
          %s410 = smul.addr %s409, 2
          %s411 = smul.addr %s410, 8
          %s412 = scalar_lea.vmem %s10, %s411
        $region60: #{self_attention_forward.1} parent=47 // pred_fallthru
          _
      $region48: #{self_attention_forward.1} parent=5 // pred_fallthru
        _
      %p413 = scmp.le.s32.totalorder 1, %s23
      %p414 = scmp.lt.s32.totalorder %s23, 3
      %p415 = pnand %p413, %p414
      %p416 = pneg %p415
      // Predicated region
      $region61: #{self_attention_forward.1} parent=5 // pred_check
        _
      $region62: #{self_attention_forward.1} parent=5 // pred_check_branch
        %418 = sbr.rel (%p415) target = $region64
      $region63: #{self_attention_forward.1} parent=5 // pred_region
        %s419 = ssub.s32 %s23, 1
        %p420 = scmp.lt.s32.totalorder %s28, 1
        %s421 = scalar_select %p420, %s28, 1
        %s422 = smul.addr %s421, 8
        %s423 = scalar_lea.vmem %s0, %s422
        %p424 = pneg %p49
        %p425 = pneg %p46
        %p426 = pneg %p70
        %p427 = pneg %p67
        %p428 = pneg %p91
        %p429 = pneg %p88
        %p430 = pneg %p112
        %p431 = pneg %p109
        %p432 = pneg %p133
        %p433 = pneg %p130
        %p434 = pneg %p154
        %p435 = pneg %p151
        %p436 = pneg %p175
        %p437 = pneg %p172
        %p438 = pneg %p196
        %p439 = pneg %p193
        %p440 = pneg %p217
        %p441 = pneg %p214
        %p442 = scmp.lt.s32.totalorder %s28, 3
        %s443 = scalar_select %p442, %s28, 3
        %s444 = smul.addr %s443, 2
        %s445 = smul.addr %s444, 8
        %s446 = scalar_lea.vmem %s9, %s445
        %p447 = pneg %p243
        %p448 = pneg %p240
        %p449 = scmp.lt.s32.totalorder %s28, 3
        %s450 = scalar_select %p449, %s28, 3
        %s451 = smul.addr %s450, 2
        %s452 = smul.addr %s451, 8
        %s453 = scalar_lea.vmem %s10, %s452
        %p454 = pneg %p269
        %p455 = pneg %p266
        %p456 = pneg %p295
        %p457 = pneg %p292
        %s458 = sand.u32 %s282, 1
        %s459 = scalar_lea.sflag [#allocation3], %s458
        %s460 = sand.u32 %s282, 1
        %s461 = smul.addr %s460, 8
        %s462 = scalar_lea.vmem [#allocation2], %s461
        %p463 = pneg %p321
        %p464 = pneg %p318
        %p465 = scmp.lt.s32.totalorder %s28, 3
        %s466 = scalar_select %p465, %s28, 3
        %s467 = smul.addr %s466, 2
        %s468 = smul.addr %s467, 8
        %s469 = scalar_lea.vmem %s12, %s468
        %p470 = pneg %p347
        %p471 = pneg %p344
        %p472 = scmp.lt.s32.totalorder %s28, 3
        %s473 = scalar_select %p472, %s28, 3
        %s474 = smul.addr %s473, 2
        %s475 = smul.addr %s474, 8
        %s476 = scalar_lea.vmem %s13, %s475
        %p477 = scmp.lt.s32.totalorder %s28, 1
        %s478 = scalar_select %p477, %s28, 1
        %s479 = smul.addr %s478, 8
        %s480 = scalar_lea.vmem %s0, %s479
        %p481 = scmp.lt.s32.totalorder %s28, 3
        %s482 = scalar_select %p481, %s28, 3
        %s483 = smul.addr %s482, 2
        %s484 = smul.addr %s483, 8
        %s485 = scalar_lea.vmem %s9, %s484
        %p486 = scmp.lt.s32.totalorder %s28, 3
        %s487 = scalar_select %p486, %s28, 3
        %s488 = smul.addr %s487, 2
        %s489 = smul.addr %s488, 8
        %s490 = scalar_lea.vmem %s10, %s489
        %p491 = scmp.lt.s32.totalorder %s28, 3
        %s492 = scalar_select %p491, %s28, 3
        %s493 = smul.addr %s492, 2
        %s494 = smul.addr %s493, 8
        %s495 = scalar_lea.vmem %s12, %s494
        %p496 = scmp.lt.s32.totalorder %s28, 3
        %s497 = scalar_select %p496, %s28, 3
        %s498 = smul.addr %s497, 2
        %s499 = smul.addr %s498, 8
        %s500 = scalar_lea.vmem %s13, %s499
        %v501 = vld [vmem:[%s480] sm:$0xff]
        %v502 = vld [vmem:[%s1] sm:$0xff]
        %v503 = vld [vmem:[%s1 + $0x8] sm:$0xff]
        %v504 = vld [vmem:[%s1 + $0x10] sm:$0xff]
        %v505 = vld [vmem:[%s1 + $0x18] sm:$0xff]
        %vm506 = vcmask 261120
        %v508 = vsel %vm506, %v501, 0
        %510 = vmatpush.msra.mxu0 0.0
        %511 = vmatpush.msra.mxu0 0.0
        %512 = vmatpush.msra.mxu0 0.0
        %513 = vmatpush.msra.mxu0 0.0
        %514 = vmatpush.msra.mxu0 0.0
        %515 = vmatpush.msra.mxu0 0.0
        %516 = vmatpush.msra.mxu0 0.0
        %517 = vmatpush.msra.mxu0 0.0
        %518 = vmatpush.msra.mxu0 0.0
        %519 = vmatpush.msra.mxu0 0.0
        %520 = vmatpush.msra.mxu0 0.0
        %521 = vmatpush.msra.mxu0 0.0
        %522 = vmatpush.msra.mxu0 %v505
        %523 = vmatpush.msra.mxu0 %v504
        %524 = vmatpush.msra.mxu0 %v503
        %525 = vmatpush.msra.mxu0 %v502
        %526 = vmatmul.f32.gmra.mxu0 %v508
        %v527 = vpop.f32.mrf.mxu0
        %v528 = vadd.f32 0.0, %v527
        %529 = vdwg.mxu0
        %v530 = vld [vmem:[%s2] sm:$0xff]
        %v531 = vld [vmem:[%s2 + $0x8] sm:$0xff]
        %v532 = vld [vmem:[%s2 + $0x10] sm:$0xff]
        %v533 = vld [vmem:[%s2 + $0x18] sm:$0xff]
        %534 = vmatpush.msra.mxu0 0.0
        %535 = vmatpush.msra.mxu0 0.0
        %536 = vmatpush.msra.mxu0 0.0
        %537 = vmatpush.msra.mxu0 0.0
        %538 = vmatpush.msra.mxu0 0.0
        %539 = vmatpush.msra.mxu0 0.0
        %540 = vmatpush.msra.mxu0 0.0
        %541 = vmatpush.msra.mxu0 0.0
        %542 = vmatpush.msra.mxu0 0.0
        %543 = vmatpush.msra.mxu0 0.0
        %544 = vmatpush.msra.mxu0 0.0
        %545 = vmatpush.msra.mxu0 0.0
        %546 = vmatpush.msra.mxu0 %v533
        %547 = vmatpush.msra.mxu0 %v532
        %548 = vmatpush.msra.mxu0 %v531
        %549 = vmatpush.msra.mxu0 %v530
        %550 = vmatmul.f32.gmra.mxu0 %v508
        %v551 = vpop.f32.mrf.mxu0
        %v552 = vadd.f32 0.0, %v551
        %553 = vdwg.mxu0
        %v554 = vld [vmem:[%s3] sm:$0xff]
        %v555 = vld [vmem:[%s3 + $0x8] sm:$0xff]
        %v556 = vld [vmem:[%s3 + $0x10] sm:$0xff]
        %v557 = vld [vmem:[%s3 + $0x18] sm:$0xff]
        %558 = vmatpush.msra.mxu0 0.0
        %559 = vmatpush.msra.mxu0 0.0
        %560 = vmatpush.msra.mxu0 0.0
        %561 = vmatpush.msra.mxu0 0.0
        %562 = vmatpush.msra.mxu0 0.0
        %563 = vmatpush.msra.mxu0 0.0
        %564 = vmatpush.msra.mxu0 0.0
        %565 = vmatpush.msra.mxu0 0.0
        %566 = vmatpush.msra.mxu0 0.0
        %567 = vmatpush.msra.mxu0 0.0
        %568 = vmatpush.msra.mxu0 0.0
        %569 = vmatpush.msra.mxu0 0.0
        %570 = vmatpush.msra.mxu0 %v557
        %571 = vmatpush.msra.mxu0 %v556
        %572 = vmatpush.msra.mxu0 %v555
        %573 = vmatpush.msra.mxu0 %v554
        %574 = vmatmul.f32.gmra.mxu0 %v508
        %v575 = vpop.f32.mrf.mxu0
        %v576 = vadd.f32 0.0, %v575
        %577 = vdwg.mxu0
        %v578 = vld [vmem:[%s4] sm:$0xff]
        %v579 = vld [vmem:[%s4 + $0x8] sm:$0xff]
        %v580 = vld [vmem:[%s4 + $0x10] sm:$0xff]
        %v581 = vld [vmem:[%s4 + $0x18] sm:$0xff]
        %582 = vmatpush.msra.mxu0 0.0
        %583 = vmatpush.msra.mxu0 0.0
        %584 = vmatpush.msra.mxu0 0.0
        %585 = vmatpush.msra.mxu0 0.0
        %586 = vmatpush.msra.mxu0 0.0
        %587 = vmatpush.msra.mxu0 0.0
        %588 = vmatpush.msra.mxu0 0.0
        %589 = vmatpush.msra.mxu0 0.0
        %590 = vmatpush.msra.mxu0 0.0
        %591 = vmatpush.msra.mxu0 0.0
        %592 = vmatpush.msra.mxu0 0.0
        %593 = vmatpush.msra.mxu0 0.0
        %594 = vmatpush.msra.mxu0 %v581
        %595 = vmatpush.msra.mxu0 %v580
        %596 = vmatpush.msra.mxu0 %v579
        %597 = vmatpush.msra.mxu0 %v578
        %598 = vmatmul.f32.gmra.mxu0 %v508
        %v599 = vpop.f32.mrf.mxu0
        %v600 = vadd.f32 0.0, %v599
        %601 = vdwg.mxu0
        %v602 = vld [vmem:[%s5] sm:$0xff]
        %v603 = vld [vmem:[%s5 + $0x8] sm:$0xff]
        %v604 = vld [vmem:[%s5 + $0x10] sm:$0xff]
        %v605 = vld [vmem:[%s5 + $0x18] sm:$0xff]
        %606 = vmatpush.msra.mxu0 0.0
        %607 = vmatpush.msra.mxu0 0.0
        %608 = vmatpush.msra.mxu0 0.0
        %609 = vmatpush.msra.mxu0 0.0
        %610 = vmatpush.msra.mxu0 0.0
        %611 = vmatpush.msra.mxu0 0.0
        %612 = vmatpush.msra.mxu0 0.0
        %613 = vmatpush.msra.mxu0 0.0
        %614 = vmatpush.msra.mxu0 0.0
        %615 = vmatpush.msra.mxu0 0.0
        %616 = vmatpush.msra.mxu0 0.0
        %617 = vmatpush.msra.mxu0 0.0
        %618 = vmatpush.msra.mxu0 %v605
        %619 = vmatpush.msra.mxu0 %v604
        %620 = vmatpush.msra.mxu0 %v603
        %621 = vmatpush.msra.mxu0 %v602
        %622 = vmatmul.f32.gmra.mxu0 %v508
        %v623 = vpop.f32.mrf.mxu0
        %v624 = vadd.f32 0.0, %v623
        %625 = vdwg.mxu0
        %v626 = vld [vmem:[%s7] sm:$0xff]
        %v627 = vld [vmem:[%s8] sm:$0xff]
        %v628 = vmul.f32 %v528, %v626
        %v629 = vmul.f32 %v552, %v627
        %v630 = vadd.f32 %v628, %v629
        %v631 = vmul.f32 %v576, %v626
        %v632 = vmul.f32 %v600, %v627
        %v633 = vadd.f32 %v631, %v632
        %v634 = vlaneseq
        %v635 = vshrl.u32 %v634, 7
        %v636 = vadd.s32 %v635, 8
        %v637 = vlaneseq
        %v638 = vand.u32 %v637, 127
        %v639 = vadd.s32 %v638, 4
        %vm640 = vcmp.eq.s32.totalorder %v635, %v639
        %vm641 = vcmp.eq.s32.totalorder %v636, %v639
        %v642 = vsel %vm640, 1, 0
        %v643 = vsel %vm641, 1, 0
        %v644 = vcvt.s32.f32 %v642
        %v645 = vcvt.s32.f32 %v643
        %vm646 = vcmp.ge.s32.totalorder %v635, 4
        %vm647 = vcmp.ge.s32.totalorder %v636, 4
        %vm648 = vcmp.lt.s32.totalorder %v635, 12
        %vm649 = vcmp.lt.s32.totalorder %v636, 12
        %vm650 = vmand %vm646, %vm648
        %vm651 = vmand %vm647, %vm649
        %vm652 = vcmask 64512
        %v654 = vsel %vm652, %v644, 0
        %v657 = vsel %vm652, %v645, 0
        %659 = vmatpush.msra.mxu0 0.0
        %660 = vmatpush.msra.mxu0 0.0
        %661 = vmatpush.msra.mxu0 0.0
        %662 = vmatpush.msra.mxu0 0.0
        %663 = vmatpush.msra.mxu0 0.0
        %664 = vmatpush.msra.mxu0 0.0
        %665 = vmatpush.msra.mxu0 0.0
        %666 = vmatpush.msra.mxu0 0.0
        %667 = vmatpush.msra.mxu0 0.0
        %668 = vmatpush.msra.mxu0 0.0
        %669 = vmatpush.msra.mxu0 0.0
        %670 = vmatpush.msra.mxu0 0.0
        %671 = vmatpush.msra.mxu0 0.0
        %672 = vmatpush.msra.mxu0 0.0
        %673 = vmatpush.msra.mxu0 0.0
        %674 = vmatpush.msra.mxu0 %v633
        %675 = vmatmul.f32.gmra.mxu0 %v654
        %v676 = vpop.f32.mrf.mxu0
        %v677 = vadd.f32 0.0, %v676
        %678 = vmatmul.f32.gmra.mxu0 %v657
        %v679 = vpop.f32.mrf.mxu0
        %v680 = vadd.f32 0.0, %v679
        %681 = vdwg.mxu0
        %v682 = vld [vmem:[%s485] sm:$0xff]
        %v683 = vld [vmem:[%s485 + $0x8] sm:$0xff]
        %v684 = vsel %vm650, %v677, %v682
        %v685 = vsel %vm651, %v680, %v683
        %686 = vmatpush.msra.mxu0 0.0
        %687 = vmatpush.msra.mxu0 0.0
        %688 = vmatpush.msra.mxu0 0.0
        %689 = vmatpush.msra.mxu0 0.0
        %690 = vmatpush.msra.mxu0 0.0
        %691 = vmatpush.msra.mxu0 0.0
        %692 = vmatpush.msra.mxu0 0.0
        %693 = vmatpush.msra.mxu0 0.0
        %694 = vmatpush.msra.mxu0 0.0
        %695 = vmatpush.msra.mxu0 0.0
        %696 = vmatpush.msra.mxu0 0.0
        %697 = vmatpush.msra.mxu0 0.0
        %698 = vmatpush.msra.mxu0 0.0
        %699 = vmatpush.msra.mxu0 0.0
        %700 = vmatpush.msra.mxu0 0.0
        %701 = vmatpush.msra.mxu0 %v624
        %702 = vmatmul.f32.gmra.mxu0 %v654
        %v703 = vpop.f32.mrf.mxu0
        %v704 = vadd.f32 0.0, %v703
        %705 = vmatmul.f32.gmra.mxu0 %v657
        %v706 = vpop.f32.mrf.mxu0
        %v707 = vadd.f32 0.0, %v706
        %708 = vdwg.mxu0
        %v709 = vld [vmem:[%s490] sm:$0xff]
        %v710 = vld [vmem:[%s490 + $0x8] sm:$0xff]
        %v711 = vsel %vm650, %v704, %v709
        %v712 = vsel %vm651, %v707, %v710
        %vm713 = vcmask 130048
        %714 = vst.msk [vmem:[%s495] sm:$0xff] %vm713, %v684
        %715 = vst.msk [vmem:[%s495 + $0x8] sm:$0xff] %vm713, %v685
        %716 = vst.msk [vmem:[%s500] sm:$0xff] %vm713, %v711
        %717 = vst.msk [vmem:[%s500 + $0x8] sm:$0xff] %vm713, %v712
        %vm718 = vcmp.lt.s32.totalorder %v638, 12
        %v720 = vsel %vm652, %v630, 0
        %v723 = vsel %vm652, %v684, 0
        %v726 = vsel %vm652, %v685, 0
        %728 = vmatpush.xpose.msra.mxu0 0.0
        %729 = vmatpush.xpose.msra.mxu0 0.0
        %730 = vmatpush.xpose.msra.mxu0 0.0
        %731 = vmatpush.xpose.msra.mxu0 0.0
        %732 = vmatpush.xpose.msra.mxu0 0.0
        %733 = vmatpush.xpose.msra.mxu0 0.0
        %734 = vmatpush.xpose.msra.mxu0 0.0
        %735 = vmatpush.xpose.msra.mxu0 0.0
        %736 = vmatpush.xpose.msra.mxu0 0.0
        %737 = vmatpush.xpose.msra.mxu0 0.0
        %738 = vmatpush.xpose.msra.mxu0 0.0
        %739 = vmatpush.xpose.msra.mxu0 0.0
        %740 = vmatpush.xpose.msra.mxu0 0.0
        %741 = vmatpush.xpose.msra.mxu0 0.0
        %742 = vmatpush.xpose.msra.mxu0 %v726
        %743 = vmatpush.xpose.msra.mxu0 %v723
        %744 = vmatmul.f32.gmra.mxu0 %v720
        %v745 = vpop.f32.mrf.mxu0
        %v746 = vadd.f32 0.0, %v745
        %747 = vdwg.mxu0
        %v748 = vmul.f32 %v746, 0.35355338
        %v749 = vsel %vm718, %v748, -1e+30
        %v750 = vsel %vm713, %v749, -inf
        %751 = vmax.xlane.f32.xlu0 %v750
        %v752 = vpop.xlane.xlu0 %751
        %v753 = vsub.f32 %v749, %v752
        %v754 = vmul.f32 %v753, 1.442695
        %v755 = vpow.pop %v754
        %v756 = vsel %vm713, %v755, 0.0
        %757 = vadd.xlane.f32.xlu0 %v756
        %v758 = vpop.xlane.xlu0 %757
        %v759 = vrcp.pop %v758
        %v760 = vmul.f32 %v755, %v759
        %v762 = vsel %vm713, %v760, 0
        %764 = vmatpush.msra.mxu0 0.0
        %765 = vmatpush.msra.mxu0 0.0
        %766 = vmatpush.msra.mxu0 0.0
        %767 = vmatpush.msra.mxu0 0.0
        %768 = vmatpush.msra.mxu0 0.0
        %769 = vmatpush.msra.mxu0 0.0
        %770 = vmatpush.msra.mxu0 0.0
        %771 = vmatpush.msra.mxu0 0.0
        %772 = vmatpush.msra.mxu0 0.0
        %773 = vmatpush.msra.mxu0 0.0
        %774 = vmatpush.msra.mxu0 0.0
        %775 = vmatpush.msra.mxu0 0.0
        %776 = vmatpush.msra.mxu0 0.0
        %777 = vmatpush.msra.mxu0 0.0
        %778 = vmatpush.msra.mxu0 %v712
        %779 = vmatpush.msra.mxu0 %v711
        %780 = vmatmul.f32.gmra.mxu0 %v762
        %v781 = vpop.f32.mrf.mxu0
        %v782 = vadd.f32 0.0, %v781
        %783 = vdwg.mxu0
        %v784 = vld [vmem:[%s6] sm:$0xff]
        %785 = vrot.lane.b32.xlu0 %v630, 120
        %v786 = vpop.permute.xlu0 %785
        %v787 = vsel %vm652, %v786, 0
        %789 = vmatpush.xpose.msra.mxu0 0.0
        %790 = vmatpush.xpose.msra.mxu0 0.0
        %791 = vmatpush.xpose.msra.mxu0 0.0
        %792 = vmatpush.xpose.msra.mxu0 0.0
        %793 = vmatpush.xpose.msra.mxu0 0.0
        %794 = vmatpush.xpose.msra.mxu0 0.0
        %795 = vmatpush.xpose.msra.mxu0 0.0
        %796 = vmatpush.xpose.msra.mxu0 0.0
        %797 = vmatpush.xpose.msra.mxu0 0.0
        %798 = vmatpush.xpose.msra.mxu0 0.0
        %799 = vmatpush.xpose.msra.mxu0 0.0
        %800 = vmatpush.xpose.msra.mxu0 0.0
        %801 = vmatpush.xpose.msra.mxu0 0.0
        %802 = vmatpush.xpose.msra.mxu0 0.0
        %803 = vmatpush.xpose.msra.mxu0 %v726
        %804 = vmatpush.xpose.msra.mxu0 %v723
        %805 = vmatmul.f32.gmra.mxu0 %v787
        %v806 = vpop.f32.mrf.mxu0
        %v807 = vadd.f32 0.0, %v806
        %808 = vdwg.mxu0
        %v809 = vmul.f32 %v807, 0.35355338
        %v810 = vsel %vm718, %v809, -1e+30
        %v811 = vsel %vm713, %v810, -inf
        %812 = vmax.xlane.f32.xlu0 %v811
        %v813 = vpop.xlane.xlu0 %812
        %v814 = vsub.f32 %v810, %v813
        %v815 = vmul.f32 %v814, 1.442695
        %v816 = vpow.pop %v815
        %v817 = vsel %vm713, %v816, 0.0
        %818 = vadd.xlane.f32.xlu0 %v817
        %v819 = vpop.xlane.xlu0 %818
        %v820 = vrcp.pop %v819
        %v821 = vmul.f32 %v816, %v820
        %v823 = vsel %vm713, %v821, 0
        %825 = vmatpush.msra.mxu0 0.0
        %826 = vmatpush.msra.mxu0 0.0
        %827 = vmatpush.msra.mxu0 0.0
        %828 = vmatpush.msra.mxu0 0.0
        %829 = vmatpush.msra.mxu0 0.0
        %830 = vmatpush.msra.mxu0 0.0
        %831 = vmatpush.msra.mxu0 0.0
        %832 = vmatpush.msra.mxu0 0.0
        %833 = vmatpush.msra.mxu0 0.0
        %834 = vmatpush.msra.mxu0 0.0
        %835 = vmatpush.msra.mxu0 0.0
        %836 = vmatpush.msra.mxu0 0.0
        %837 = vmatpush.msra.mxu0 0.0
        %838 = vmatpush.msra.mxu0 0.0
        %839 = vmatpush.msra.mxu0 %v712
        %840 = vmatpush.msra.mxu0 %v711
        %841 = vmatmul.f32.gmra.mxu0 %v823
        %v842 = vpop.f32.mrf.mxu0
        %v843 = vadd.f32 0.0, %v842
        %844 = vdwg.mxu0
        %v845 = vld [vmem:[%s6 + $0x8] sm:$0xff]
        %v847 = vsel %vm652, %v843, 0
        %849 = vmatpush.msra.mxu0 0.0
        %850 = vmatpush.msra.mxu0 0.0
        %851 = vmatpush.msra.mxu0 0.0
        %852 = vmatpush.msra.mxu0 0.0
        %853 = vmatpush.msra.mxu0 0.0
        %854 = vmatpush.msra.mxu0 0.0
        %855 = vmatpush.msra.mxu0 0.0
        %856 = vmatpush.msra.mxu0 0.0
        %857 = vmatpush.msra.mxu0 0.0
        %858 = vmatpush.msra.mxu0 0.0
        %859 = vmatpush.msra.mxu0 0.0
        %860 = vmatpush.msra.mxu0 0.0
        %861 = vmatpush.msra.mxu0 0.0
        %862 = vmatpush.msra.mxu0 0.0
        %863 = vmatpush.msra.mxu0 0.0
        %864 = vmatpush.msra.mxu0 %v845
        %865 = vmatmul.f32.gmra.mxu0 %v847
        %v866 = vpop.f32.mrf.mxu0
        %v867 = vadd.f32 0.0, %v866
        %868 = vdwg.mxu0
        %v870 = vsel %vm652, %v782, 0
        %872 = vmatpush.msra.mxu0 0.0
        %873 = vmatpush.msra.mxu0 0.0
        %874 = vmatpush.msra.mxu0 0.0
        %875 = vmatpush.msra.mxu0 0.0
        %876 = vmatpush.msra.mxu0 0.0
        %877 = vmatpush.msra.mxu0 0.0
        %878 = vmatpush.msra.mxu0 0.0
        %879 = vmatpush.msra.mxu0 0.0
        %880 = vmatpush.msra.mxu0 0.0
        %881 = vmatpush.msra.mxu0 0.0
        %882 = vmatpush.msra.mxu0 0.0
        %883 = vmatpush.msra.mxu0 0.0
        %884 = vmatpush.msra.mxu0 0.0
        %885 = vmatpush.msra.mxu0 0.0
        %886 = vmatpush.msra.mxu0 0.0
        %887 = vmatpush.msra.mxu0 %v784
        %888 = vmatmul.f32.gmra.mxu0 %v870
        %v889 = vpop.f32.mrf.mxu0
        %v890 = vadd.f32 %v867, %v889
        %891 = vdwg.mxu0
        %892 = vrot.lane.b32.xlu0 %v630, 112
        %v893 = vpop.permute.xlu0 %892
        %894 = vrot.lane.b32.xlu0 %v684, 120
        %v895 = vpop.permute.xlu0 %894
        %896 = vrot.lane.b32.xlu0 %v685, 120
        %v897 = vpop.permute.xlu0 %896
        %v898 = vsel %vm652, %v893, 0
        %v900 = vsel %vm652, %v895, 0
        %v902 = vsel %vm652, %v897, 0
        %904 = vmatpush.xpose.msra.mxu0 0.0
        %905 = vmatpush.xpose.msra.mxu0 0.0
        %906 = vmatpush.xpose.msra.mxu0 0.0
        %907 = vmatpush.xpose.msra.mxu0 0.0
        %908 = vmatpush.xpose.msra.mxu0 0.0
        %909 = vmatpush.xpose.msra.mxu0 0.0
        %910 = vmatpush.xpose.msra.mxu0 0.0
        %911 = vmatpush.xpose.msra.mxu0 0.0
        %912 = vmatpush.xpose.msra.mxu0 0.0
        %913 = vmatpush.xpose.msra.mxu0 0.0
        %914 = vmatpush.xpose.msra.mxu0 0.0
        %915 = vmatpush.xpose.msra.mxu0 0.0
        %916 = vmatpush.xpose.msra.mxu0 0.0
        %917 = vmatpush.xpose.msra.mxu0 0.0
        %918 = vmatpush.xpose.msra.mxu0 %v902
        %919 = vmatpush.xpose.msra.mxu0 %v900
        %920 = vmatmul.f32.gmra.mxu0 %v898
        %v921 = vpop.f32.mrf.mxu0
        %v922 = vadd.f32 0.0, %v921
        %923 = vdwg.mxu0
        %v924 = vmul.f32 %v922, 0.35355338
        %v925 = vsel %vm718, %v924, -1e+30
        %v926 = vsel %vm713, %v925, -inf
        %927 = vmax.xlane.f32.xlu0 %v926
        %v928 = vpop.xlane.xlu0 %927
        %v929 = vsub.f32 %v925, %v928
        %v930 = vmul.f32 %v929, 1.442695
        %v931 = vpow.pop %v930
        %v932 = vsel %vm713, %v931, 0.0
        %933 = vadd.xlane.f32.xlu0 %v932
        %v934 = vpop.xlane.xlu0 %933
        %v935 = vrcp.pop %v934
        %v936 = vmul.f32 %v931, %v935
        %939 = vrot.lane.b32.xlu0 %v711, 120
        %v940 = vpop.permute.xlu0 %939
        %941 = vrot.lane.b32.xlu0 %v712, 120
        %v942 = vpop.permute.xlu0 %941
        %v946 = vsel %vm713, %v936, 0
        %948 = vmatpush.msra.mxu0 0.0
        %949 = vmatpush.msra.mxu0 0.0
        %950 = vmatpush.msra.mxu0 0.0
        %951 = vmatpush.msra.mxu0 0.0
        %952 = vmatpush.msra.mxu0 0.0
        %953 = vmatpush.msra.mxu0 0.0
        %954 = vmatpush.msra.mxu0 0.0
        %955 = vmatpush.msra.mxu0 0.0
        %956 = vmatpush.msra.mxu0 0.0
        %957 = vmatpush.msra.mxu0 0.0
        %958 = vmatpush.msra.mxu0 0.0
        %959 = vmatpush.msra.mxu0 0.0
        %960 = vmatpush.msra.mxu0 0.0
        %961 = vmatpush.msra.mxu0 0.0
        %962 = vmatpush.msra.mxu0 %v942
        %963 = vmatpush.msra.mxu0 %v940
        %964 = vmatmul.f32.gmra.mxu0 %v946
        %v965 = vpop.f32.mrf.mxu0
        %v966 = vadd.f32 0.0, %v965
        %967 = vdwg.mxu0
        %v968 = vld [vmem:[%s6 + $0x10] sm:$0xff]
        %v970 = vsel %vm652, %v966, 0
        %972 = vmatpush.msra.mxu0 0.0
        %973 = vmatpush.msra.mxu0 0.0
        %974 = vmatpush.msra.mxu0 0.0
        %975 = vmatpush.msra.mxu0 0.0
        %976 = vmatpush.msra.mxu0 0.0
        %977 = vmatpush.msra.mxu0 0.0
        %978 = vmatpush.msra.mxu0 0.0
        %979 = vmatpush.msra.mxu0 0.0
        %980 = vmatpush.msra.mxu0 0.0
        %981 = vmatpush.msra.mxu0 0.0
        %982 = vmatpush.msra.mxu0 0.0
        %983 = vmatpush.msra.mxu0 0.0
        %984 = vmatpush.msra.mxu0 0.0
        %985 = vmatpush.msra.mxu0 0.0
        %986 = vmatpush.msra.mxu0 0.0
        %987 = vmatpush.msra.mxu0 %v968
        %988 = vmatmul.f32.gmra.mxu0 %v970
        %v989 = vpop.f32.mrf.mxu0
        %v990 = vadd.f32 0.0, %v989
        %991 = vdwg.mxu0
        %v992 = vadd.f32 %v890, %v990
        %993 = vrot.lane.b32.xlu0 %v630, 104
        %v994 = vpop.permute.xlu0 %993
        %v995 = vsel %vm652, %v994, 0
        %997 = vmatpush.xpose.msra.mxu0 0.0
        %998 = vmatpush.xpose.msra.mxu0 0.0
        %999 = vmatpush.xpose.msra.mxu0 0.0
        %1000 = vmatpush.xpose.msra.mxu0 0.0
        %1001 = vmatpush.xpose.msra.mxu0 0.0
        %1002 = vmatpush.xpose.msra.mxu0 0.0
        %1003 = vmatpush.xpose.msra.mxu0 0.0
        %1004 = vmatpush.xpose.msra.mxu0 0.0
        %1005 = vmatpush.xpose.msra.mxu0 0.0
        %1006 = vmatpush.xpose.msra.mxu0 0.0
        %1007 = vmatpush.xpose.msra.mxu0 0.0
        %1008 = vmatpush.xpose.msra.mxu0 0.0
        %1009 = vmatpush.xpose.msra.mxu0 0.0
        %1010 = vmatpush.xpose.msra.mxu0 0.0
        %1011 = vmatpush.xpose.msra.mxu0 %v902
        %1012 = vmatpush.xpose.msra.mxu0 %v900
        %1013 = vmatmul.f32.gmra.mxu0 %v995
        %v1014 = vpop.f32.mrf.mxu0
        %v1015 = vadd.f32 0.0, %v1014
        %1016 = vdwg.mxu0
        %v1017 = vmul.f32 %v1015, 0.35355338
        %v1018 = vsel %vm718, %v1017, -1e+30
        %v1019 = vsel %vm713, %v1018, -inf
        %1020 = vmax.xlane.f32.xlu0 %v1019
        %v1021 = vpop.xlane.xlu0 %1020
        %v1022 = vsub.f32 %v1018, %v1021
        %v1023 = vmul.f32 %v1022, 1.442695
        %v1024 = vpow.pop %v1023
        %v1025 = vsel %vm713, %v1024, 0.0
        %1026 = vadd.xlane.f32.xlu0 %v1025
        %v1027 = vpop.xlane.xlu0 %1026
        %v1028 = vrcp.pop %v1027
        %v1029 = vmul.f32 %v1024, %v1028
        %v1031 = vsel %vm713, %v1029, 0
        %1033 = vmatpush.msra.mxu0 0.0
        %1034 = vmatpush.msra.mxu0 0.0
        %1035 = vmatpush.msra.mxu0 0.0
        %1036 = vmatpush.msra.mxu0 0.0
        %1037 = vmatpush.msra.mxu0 0.0
        %1038 = vmatpush.msra.mxu0 0.0
        %1039 = vmatpush.msra.mxu0 0.0
        %1040 = vmatpush.msra.mxu0 0.0
        %1041 = vmatpush.msra.mxu0 0.0
        %1042 = vmatpush.msra.mxu0 0.0
        %1043 = vmatpush.msra.mxu0 0.0
        %1044 = vmatpush.msra.mxu0 0.0
        %1045 = vmatpush.msra.mxu0 0.0
        %1046 = vmatpush.msra.mxu0 0.0
        %1047 = vmatpush.msra.mxu0 %v942
        %1048 = vmatpush.msra.mxu0 %v940
        %1049 = vmatmul.f32.gmra.mxu0 %v1031
        %v1050 = vpop.f32.mrf.mxu0
        %v1051 = vadd.f32 0.0, %v1050
        %1052 = vdwg.mxu0
        %v1053 = vld [vmem:[%s6 + $0x18] sm:$0xff]
        %v1055 = vsel %vm652, %v1051, 0
        %1057 = vmatpush.msra.mxu0 0.0
        %1058 = vmatpush.msra.mxu0 0.0
        %1059 = vmatpush.msra.mxu0 0.0
        %1060 = vmatpush.msra.mxu0 0.0
        %1061 = vmatpush.msra.mxu0 0.0
        %1062 = vmatpush.msra.mxu0 0.0
        %1063 = vmatpush.msra.mxu0 0.0
        %1064 = vmatpush.msra.mxu0 0.0
        %1065 = vmatpush.msra.mxu0 0.0
        %1066 = vmatpush.msra.mxu0 0.0
        %1067 = vmatpush.msra.mxu0 0.0
        %1068 = vmatpush.msra.mxu0 0.0
        %1069 = vmatpush.msra.mxu0 0.0
        %1070 = vmatpush.msra.mxu0 0.0
        %1071 = vmatpush.msra.mxu0 0.0
        %1072 = vmatpush.msra.mxu0 %v1053
        %1073 = vmatmul.f32.gmra.mxu0 %v1055
        %v1074 = vpop.f32.mrf.mxu0
        %v1075 = vadd.f32 0.0, %v1074
        %1076 = vdwg.mxu0
        %v1077 = vadd.f32 %v992, %v1075
        %1078 = vst.msk [vmem:[%s462] sm:$0xff] %vm506, %v1077
        %s1079 = sand.u32 %s282, 1
        %s1080 = scalar_lea.sflag [#allocation3], %s1079
        %s1081 = sand.u32 %s282, 1
        %s1082 = smul.addr %s1081, 8
        %s1083 = scalar_lea.vmem [#allocation2], %s1082
        %p1084 = scmp.lt.s32.totalorder %s28, 3
        %s1085 = scalar_select %p1084, %s28, 3
        %s1086 = smul.addr %s1085, 2
        %s1087 = smul.addr %s1086, 8
        %s1088 = scalar_lea.vmem %s12, %s1087
        %p1089 = scmp.lt.s32.totalorder %s28, 3
        %s1090 = scalar_select %p1089, %s28, 3
        %s1091 = smul.addr %s1090, 2
        %s1092 = smul.addr %s1091, 8
        %s1093 = scalar_lea.vmem %s13, %s1092
        // Predicated region
        $region65: #{self_attention_forward.1} parent=63 // pred_check
          %p1094 = pneg %p292
        $region66: #{self_attention_forward.1} parent=63 // pred_check_branch
          %1096 = sbr.rel (%p1094) target = $region68
        $region67: #{self_attention_forward.1} parent=63 // pred_region
          %1098 = vsyncadd %s1080, 0
          %s1099 = smul.addr %s28, 8
          %s1100 = scalar_lea.hbm %s11, %s1099
          %s1102 = sshll.u32 %s1083, 4
          %s1103 = int_to_ptr.vmem [resolvable:$true] %s1102
          %s1104 = sshll.u32 %s1100, 4
          %s1105 = int_to_ptr.hbm [resolvable:$true] %s1104
          %1107 = dma.vmem_to_hbm [thread:$0]  %s1103, 128, %s1105, %s1080
        $region68: #{self_attention_forward.1} parent=63 // pred_fallthru
          _
        // Predicated region
        $region69: #{self_attention_forward.1} parent=63 // pred_check
          %p1108 = pneg %p318
        $region70: #{self_attention_forward.1} parent=63 // pred_check_branch
          %1110 = sbr.rel (%p1108) target = $region72
        $region71: #{self_attention_forward.1} parent=63 // pred_region
          _
        $region72: #{self_attention_forward.1} parent=63 // pred_fallthru
          _
        // Predicated region
        $region73: #{self_attention_forward.1} parent=63 // pred_check
          %p1111 = pneg %p344
        $region74: #{self_attention_forward.1} parent=63 // pred_check_branch
          %1113 = sbr.rel (%p1111) target = $region76
        $region75: #{self_attention_forward.1} parent=63 // pred_region
          _
        $region76: #{self_attention_forward.1} parent=63 // pred_fallthru
          _
      $region64: #{self_attention_forward.1} parent=5 // pred_fallthru
        _
      %p1114 = scmp.le.s32.totalorder 2, %s23
      // Predicated region
      $region77: #{self_attention_forward.1} parent=5 // pred_check
        %p1115 = pneg %p1114
      $region78: #{self_attention_forward.1} parent=5 // pred_check_branch
        %1117 = sbr.rel (%p1115) target = $region80
      $region79: #{self_attention_forward.1} parent=5 // pred_region
        %s1118 = ssub.s32 %s23, 2
        // Predicated region
        $region81: #{self_attention_forward.1} parent=79 // pred_check
          %p1119 = pneg %p298
        $region82: #{self_attention_forward.1} parent=79 // pred_check_branch
          %1121 = sbr.rel (%p1119) target = $region84
        $region83: #{self_attention_forward.1} parent=79 // pred_region
          %s1122 = sand.u32 %s283, 1
          %s1123 = scalar_lea.sflag [#allocation3], %s1122
          %s1124 = sand.u32 %s283, 1
          %s1125 = smul.addr %s1124, 8
          %s1126 = scalar_lea.vmem [#allocation2], %s1125
          %1128 = dma.done %s1123, 128
        $region84: #{self_attention_forward.1} parent=79 // pred_fallthru
          _
        // Predicated region
        $region85: #{self_attention_forward.1} parent=79 // pred_check
          %p1129 = pneg %p324
        $region86: #{self_attention_forward.1} parent=79 // pred_check_branch
          %1131 = sbr.rel (%p1129) target = $region88
        $region87: #{self_attention_forward.1} parent=79 // pred_region
          %p1132 = scmp.lt.s32.totalorder %s29, 3
          %s1133 = scalar_select %p1132, %s29, 3
          %s1134 = smul.addr %s1133, 2
          %s1135 = smul.addr %s1134, 8
          %s1136 = scalar_lea.vmem %s12, %s1135
        $region88: #{self_attention_forward.1} parent=79 // pred_fallthru
          _
        // Predicated region
        $region89: #{self_attention_forward.1} parent=79 // pred_check
          %p1137 = pneg %p350
        $region90: #{self_attention_forward.1} parent=79 // pred_check_branch
          %1139 = sbr.rel (%p1137) target = $region92
        $region91: #{self_attention_forward.1} parent=79 // pred_region
          %p1140 = scmp.lt.s32.totalorder %s29, 3
          %s1141 = scalar_select %p1140, %s29, 3
          %s1142 = smul.addr %s1141, 2
          %s1143 = smul.addr %s1142, 8
          %s1144 = scalar_lea.vmem %s13, %s1143
        $region92: #{self_attention_forward.1} parent=79 // pred_fallthru
          _
      $region80: #{self_attention_forward.1} parent=5 // pred_fallthru
        _
    $region6: #{self_attention_forward.1} parent=1 // loop_footer
      %s27 = sadd.s32 1, %s23
    $region7: #{self_attention_forward.1} parent=1 // loop_footer_branch
      %22 = sbr.rel target = $region3
    $region8: #{self_attention_forward.1} parent=1 // loop_exit
      _
    %1145 = vsyncpa [#allocation3], 1
    %s1146 = scalar_lea.sflag [#allocation3], 1
    %1147 = vsyncpa %s1146, 1

</llo_original>
